<compile_context>
chip_gen: v5e
topology: v5e:2x2
jax: 0.10.0
libtpu: 0.0.40
codegen_flags: <defaults>
</compile_context>

<pallas_src>
import functools

import jax
import jax.numpy as jnp
import numpy as np
from jax.experimental import pallas as pl
from jax.experimental.pallas import tpu as pltpu


# --------------------- in-kernel scaled-permutation blocks -------------------
def _sym_perm_block(s, *, k, kk):
    """(kk, 4*kk) block whose column block t is 0.25 * P(rot90^((s - t) mod 4)).

    P is the permutation matrix with flat(Y) @ P == flat(op(Y)), where
    op = rot90 = transpose(-2, -1).flip(-2) (the module's canonicalization op).
    Built purely from iotas, compares, selects and adds (VPU only; no HBM
    operand, no closed-over constants, no integer vector division).
    """
    src_row = jax.lax.broadcasted_iota(jnp.int32, (kk, 4 * kk), 0)   # source flat idx
    col = jax.lax.broadcasted_iota(jnp.int32, (kk, 4 * kk), 1)       # t*kk + p
    # t = col // kk, p = col % kk   (threshold form -> no vector int division)
    t = ((col >= kk).astype(jnp.int32)
         + (col >= 2 * kk).astype(jnp.int32)
         + (col >= 3 * kk).astype(jnp.int32))
    p = col - t * kk
    # a = p // k, b = p % k
    a = jnp.zeros_like(p)
    for i in range(1, k):
        a = a + (p >= i * k).astype(jnp.int32)
    b = p - a * k
    m = (s + 4 - t) & 3                                   # (s - t) mod 4 rotations
    km1 = k - 1
    # source coords for m quarter-turn rotations: dest (a, b) <- src (sa, sb)
    src_a = jnp.where(m == 0, a,
             jnp.where(m == 1, b,
              jnp.where(m == 2, km1 - a, km1 - b)))
    src_b = jnp.where(m == 0, b,
             jnp.where(m == 1, km1 - a,
              jnp.where(m == 2, km1 - b, a)))
    src = src_a * k + src_b
    return jnp.where(src_row == src, 0.25, 0.0).astype(jnp.float32)


# ----------------------------- Pallas kernel --------------------------------
def _avg_basis_kernel(gb_ref, x_ref, o_ref, *, k, kk, nr_basis, nquad, rows_q):
    # gb_ref: (B, 2, D) f32 scalar-prefetch operand in SMEM (gamma row 0, beta row 1)
    # x_ref:  (1, S*D, kk) f32 unnormalized basis block (VMEM), rows are (s, d)-major
    # o_ref:  (1, rows_q, 4*kk) f32 packed output block (column block t = quadrant t)
    b = pl.program_id(0)
    x = x_ref[0]                                          # (4*rows_q, kk)

    # per-row standardization (torch: mean(-1), unbiased std(-1), eps added to std)
    mean = jnp.mean(x, axis=-1, keepdims=True)
    cen = x - mean
    var = jnp.sum(cen * cen, axis=-1, keepdims=True) * (1.0 / (kk - 1))
    z = cen / (jnp.sqrt(var) + 1e-12)                     # (4*rows_q, kk)

    # C4 symmetrization: acc[:, t*kk:(t+1)*kk] = 0.25 * sum_s rot^{(s-t)%4}(z_s).
    # LHS slices are clean sublane slices (rows_q == 8 here -> offsets 0/8/16/24);
    # RHS blocks are in-kernel scaled permutations, so no lane relayout and no
    # "M" HBM operand.  precision=HIGHEST keeps the permutation matmul exact.
    acc = jnp.zeros((rows_q, 4 * kk), dtype=jnp.float32)
    for s in range(4):
        ms = _sym_perm_block(s, k=k, kk=kk)
        acc = acc + jnp.dot(z[s * rows_q:(s + 1) * rows_q, :], ms,
                            preferred_element_type=jnp.float32,
                            precision=jax.lax.Precision.HIGHEST)

    # gamma/beta commute with the permutation-average (permutations never mix
    # rows and the weights sum to 1), so apply them once on the packed tile.
    # Row r of the packed tile has basis index d = r % D (threshold form).
    row = jax.lax.broadcasted_iota(jnp.int32, (rows_q, 1), 0)
    sdiv = jnp.zeros_like(row)
    for i in range(1, nquad):
        sdiv = sdiv + (row >= i * nr_basis).astype(jnp.int32)
    d_idx = row - sdiv * nr_basis
    g = jnp.zeros((rows_q, 1), dtype=jnp.float32)
    be = jnp.zeros((rows_q, 1), dtype=jnp.float32)
    for j in range(nr_basis):                             # static, tiny D
        sel = d_idx == j
        g = jnp.where(sel, gb_ref[b, 0, j], g)
        be = jnp.where(sel, gb_ref[b, 1, j], be)
    o_ref[0] = acc * g + be


# ------------------------------ glue / wrapper -------------------------------
def average_basis_normalize_batched(unnorm_basis, gamma, beta):
    """unnorm_basis: (B, S, D, k, k) f32; gamma, beta: (B, D) f32 -> (B, S, D, k, k)."""
    B, S, D, k, k2 = unnorm_basis.shape
    assert k == k2
    assert S % 4 == 0, "nr_group_elems must be divisible by 4"
    assert k >= 2, "unbiased std needs basis_sz >= 2"
    kk = k * k
    nquad = S // 4
    rows_q = nquad * D

    x = unnorm_basis.reshape(B, S * D, kk).astype(jnp.float32)   # pure reshape
    gb = jnp.stack([gamma, beta], axis=1).astype(jnp.float32)    # (B, 2, D) -> SMEM

    kernel = functools.partial(_avg_basis_kernel, k=k, kk=kk, nr_basis=D,
                               nquad=nquad, rows_q=rows_q)
    out_packed = pl.pallas_call(
        kernel,
        out_shape=jax.ShapeDtypeStruct((B, rows_q, 4 * kk), jnp.float32),
        grid_spec=pltpu.PrefetchScalarGridSpec(
            num_scalar_prefetch=1,                  # gamma/beta land in SMEM once
            grid=(B,),                              # one basis per grid step
            in_specs=[pl.BlockSpec((1, S * D, kk), lambda b, gb_ref: (b, 0, 0))],
            out_specs=pl.BlockSpec((1, rows_q, 4 * kk), lambda b, gb_ref: (b, 0, 0)),
        ),
        compiler_params=pltpu.CompilerParams(dimension_semantics=("parallel",)),
    )(gb, x)

    # Unpack the lane-packed (rows_q, 4*kk) tile back to (S, D, k, k):
    # column block t holds output group-quadrant t.  Pure layout plumbing.
    out = (out_packed.reshape(B, nquad, D, 4, kk)
           .transpose(0, 3, 1, 2, 4)
           .reshape(B, S, D, k, k))
    return out


def average_basis_normalize(unnorm_basis, gamma, beta):
    """Single-module API: unnorm (S, D, k, k), gamma/beta (D,) -> (S, D, k, k)."""
    return average_basis_normalize_batched(unnorm_basis[None], gamma[None],
                                           beta[None])[0]


# ------------------------------ pure-JAX reference ---------------------------
def _reference(unnorm, gamma, beta):
    S, D, k, _ = unnorm.shape
    q = S // 4
    mean = unnorm.reshape(S, D, -1).mean(-1)
    std = unnorm.reshape(S, D, -1).std(-1, ddof=1)
    eps = 1e-12
    nb = (gamma[:, None, None] * (unnorm - mean[:, :, None, None])
          / (std[:, :, None, None] + eps) + beta[:, None, None])
    nb = nb.at[q:2 * q].set(jnp.flip(jnp.swapaxes(nb[q:2 * q], -2, -1), -2))
    nb = nb.at[2 * q:3 * q].set(jnp.flip(nb[2 * q:3 * q], (-2, -1)))
    nb = nb.at[3 * q:4 * q].set(jnp.flip(jnp.swapaxes(nb[3 * q:4 * q], -2, -1), -1))
    for i in range(q):
        avg = nb[i::q].mean(0, keepdims=True)
        nb = nb.at[i::q].set(jnp.broadcast_to(avg, nb[i::q].shape))
    nb = nb.at[q:2 * q].set(jnp.flip(jnp.swapaxes(nb[q:2 * q], -2, -1), -1))
    nb = nb.at[2 * q:3 * q].set(jnp.flip(nb[2 * q:3 * q], (-2, -1)))
    nb = nb.at[3 * q:4 * q].set(jnp.flip(jnp.swapaxes(nb[3 * q:4 * q], -2, -1), -2))
    return nb


# ----------------------------------- main ------------------------------------
if __name__ == "__main__":
    # module config: normalize=(45.0, True, True, True, True),
    #                nr_basis=4, basis_sz=3, nr_group_elems=8
    nr_group_elems, nr_basis, basis_sz = 8, 4, 3
    B = 8   # batch of independent AverageBasis modules processed in one call

    key = jax.random.PRNGKey(0)
    k1, k2, k3 = jax.random.split(key, 3)
    # reset_parameters(): normal(0, 1/45); gamma/beta as after some training
    unnorm = (1.0 / 45.0) * jax.random.normal(
        k1, (B, nr_group_elems, nr_basis, basis_sz, basis_sz), dtype=jnp.float32)
    gamma = (1.0 / 45.0) * (1.0 + 0.1 * jax.random.normal(
        k2, (B, nr_basis), dtype=jnp.float32))
    beta = 0.01 * jax.random.normal(k3, (B, nr_basis), dtype=jnp.float32)

    out = jax.block_until_ready(average_basis_normalize_batched(unnorm, gamma, beta))
    assert out.shape == unnorm.shape
    for bi in range(B):
        ref = _reference(unnorm[bi], gamma[bi], beta[bi])
        np.testing.assert_allclose(np.asarray(out[bi]), np.asarray(ref),
                                   rtol=1e-5, atol=1e-6)

    # single-module path (exactly the PyTorch module's own shapes)
    out1 = jax.block_until_ready(
        average_basis_normalize(unnorm[0], gamma[0], beta[0]))
    np.testing.assert_allclose(np.asarray(out1),
                               np.asarray(_reference(unnorm[0], gamma[0], beta[0])),
                               rtol=1e-5, atol=1e-6)

    print("KERNEL_OK")
</pallas_src>

<mosaic_0001>
module attributes {stable_mosaic.version = 11 : i64} {
  func.func @_avg_basis_kernel(%arg0: i32, %arg1: memref<8x2x4xf32, #tpu.memory_space<smem>>, %arg2: memref<1x32x9xf32, #tpu.memory_space<vmem>>, %arg3: memref<1x8x36xf32, #tpu.memory_space<vmem>>) attributes {dimension_semantics = [#tpu.dimension_semantics<parallel>], iteration_bounds = array<i64: 8>, scalar_prefetch = 1 : i64, scratch_operands = 0 : i64, tpu.core_type = #tpu.core_type<tc>, window_params = [{transform_indices = @transform_0, window_bounds = array<i64: 1, 32, 9>}, {transform_indices = @transform_1, window_bounds = array<i64: 1, 8, 36>}]} {
    %c0 = arith.constant 0 : index
    %c0_0 = arith.constant 0 : index
    %c0_1 = arith.constant 0 : index
    %0 = vector.load %arg2[%c0, %c0_0, %c0_1] : memref<1x32x9xf32, #tpu.memory_space<vmem>>, vector<1x32x9xf32>
    %1 = vector.shape_cast %0 : vector<1x32x9xf32> to vector<32x9xf32>
    %cst = arith.constant dense<0.000000e+00> : vector<32xf32>
    %2 = vector.multi_reduction <add>, %1, %cst [1] : vector<32x9xf32> to vector<32xf32>
    %3 = vector.shape_cast %2 : vector<32xf32> to vector<32x1xf32>
    %cst_2 = arith.constant 9.000000e+00 : f32
    %4 = vector.broadcast %cst_2 : f32 to vector<32x1xf32>
    %5 = arith.divf %3, %4 : vector<32x1xf32>
    %6 = vector.broadcast %5 : vector<32x1xf32> to vector<32x9xf32>
    %7 = arith.subf %1, %6 : vector<32x9xf32>
    %8 = arith.mulf %7, %7 : vector<32x9xf32>
    %cst_3 = arith.constant dense<0.000000e+00> : vector<32xf32>
    %9 = vector.multi_reduction <add>, %8, %cst_3 [1] : vector<32x9xf32> to vector<32xf32>
    %10 = vector.shape_cast %9 : vector<32xf32> to vector<32x1xf32>
    %cst_4 = arith.constant 1.250000e-01 : f32
    %11 = vector.broadcast %cst_4 : f32 to vector<32x1xf32>
    %12 = arith.mulf %10, %11 : vector<32x1xf32>
    %13 = math.sqrt %12 : vector<32x1xf32>
    %cst_5 = arith.constant 9.99999996E-13 : f32
    %14 = vector.broadcast %cst_5 : f32 to vector<32x1xf32>
    %15 = arith.addf %13, %14 : vector<32x1xf32>
    %16 = vector.broadcast %15 : vector<32x1xf32> to vector<32x9xf32>
    %17 = arith.divf %7, %16 : vector<32x9xf32>
    %cst_6 = arith.constant 0.000000e+00 : f32
    %18 = vector.broadcast %cst_6 : f32 to vector<8x36xf32>
    %19 = tpu.iota {dimensions = array<i32: 0>} : vector<9x36xi32>
    %20 = tpu.iota {dimensions = array<i32: 1>} : vector<9x36xi32>
    %c9_i32 = arith.constant 9 : i32
    %21 = vector.broadcast %c9_i32 : i32 to vector<9x36xi32>
    %22 = arith.cmpi sge, %20, %21 : vector<9x36xi32>
    %23 = arith.extui %22 : vector<9x36xi1> to vector<9x36xi32>
    %c18_i32 = arith.constant 18 : i32
    %24 = vector.broadcast %c18_i32 : i32 to vector<9x36xi32>
    %25 = arith.cmpi sge, %20, %24 : vector<9x36xi32>
    %26 = arith.extui %25 : vector<9x36xi1> to vector<9x36xi32>
    %27 = arith.addi %23, %26 : vector<9x36xi32>
    %c27_i32 = arith.constant 27 : i32
    %28 = vector.broadcast %c27_i32 : i32 to vector<9x36xi32>
    %29 = arith.cmpi sge, %20, %28 : vector<9x36xi32>
    %30 = arith.extui %29 : vector<9x36xi1> to vector<9x36xi32>
    %31 = arith.addi %27, %30 : vector<9x36xi32>
    %c9_i32_7 = arith.constant 9 : i32
    %32 = vector.broadcast %c9_i32_7 : i32 to vector<9x36xi32>
    %33 = arith.muli %31, %32 : vector<9x36xi32>
    %34 = arith.subi %20, %33 : vector<9x36xi32>
    %c0_i32 = arith.constant 0 : i32
    %35 = vector.broadcast %c0_i32 : i32 to vector<9x36xi32>
    %c3_i32 = arith.constant 3 : i32
    %36 = vector.broadcast %c3_i32 : i32 to vector<9x36xi32>
    %37 = arith.cmpi sge, %34, %36 : vector<9x36xi32>
    %38 = arith.extui %37 : vector<9x36xi1> to vector<9x36xi32>
    %39 = arith.addi %35, %38 : vector<9x36xi32>
    %c6_i32 = arith.constant 6 : i32
    %40 = vector.broadcast %c6_i32 : i32 to vector<9x36xi32>
    %41 = arith.cmpi sge, %34, %40 : vector<9x36xi32>
    %42 = arith.extui %41 : vector<9x36xi1> to vector<9x36xi32>
    %43 = arith.addi %39, %42 : vector<9x36xi32>
    %c3_i32_8 = arith.constant 3 : i32
    %44 = vector.broadcast %c3_i32_8 : i32 to vector<9x36xi32>
    %45 = arith.muli %43, %44 : vector<9x36xi32>
    %46 = arith.subi %34, %45 : vector<9x36xi32>
    %c4_i32 = arith.constant 4 : i32
    %47 = vector.broadcast %c4_i32 : i32 to vector<9x36xi32>
    %48 = arith.subi %47, %31 : vector<9x36xi32>
    %c3_i32_9 = arith.constant 3 : i32
    %49 = vector.broadcast %c3_i32_9 : i32 to vector<9x36xi32>
    %50 = arith.andi %48, %49 : vector<9x36xi32>
    %c0_i32_10 = arith.constant 0 : i32
    %51 = vector.broadcast %c0_i32_10 : i32 to vector<9x36xi32>
    %52 = arith.cmpi eq, %50, %51 : vector<9x36xi32>
    %c1_i32 = arith.constant 1 : i32
    %53 = vector.broadcast %c1_i32 : i32 to vector<9x36xi32>
    %54 = arith.cmpi eq, %50, %53 : vector<9x36xi32>
    %c2_i32 = arith.constant 2 : i32
    %55 = vector.broadcast %c2_i32 : i32 to vector<9x36xi32>
    %56 = arith.cmpi eq, %50, %55 : vector<9x36xi32>
    %c2_i32_11 = arith.constant 2 : i32
    %57 = vector.broadcast %c2_i32_11 : i32 to vector<9x36xi32>
    %58 = arith.subi %57, %43 : vector<9x36xi32>
    %c2_i32_12 = arith.constant 2 : i32
    %59 = vector.broadcast %c2_i32_12 : i32 to vector<9x36xi32>
    %60 = arith.subi %59, %46 : vector<9x36xi32>
    %61 = arith.select %56, %58, %60 : vector<9x36xi1>, vector<9x36xi32>
    %62 = arith.select %54, %46, %61 : vector<9x36xi1>, vector<9x36xi32>
    %63 = arith.select %52, %43, %62 : vector<9x36xi1>, vector<9x36xi32>
    %c0_i32_13 = arith.constant 0 : i32
    %64 = vector.broadcast %c0_i32_13 : i32 to vector<9x36xi32>
    %65 = arith.cmpi eq, %50, %64 : vector<9x36xi32>
    %c1_i32_14 = arith.constant 1 : i32
    %66 = vector.broadcast %c1_i32_14 : i32 to vector<9x36xi32>
    %67 = arith.cmpi eq, %50, %66 : vector<9x36xi32>
    %c2_i32_15 = arith.constant 2 : i32
    %68 = vector.broadcast %c2_i32_15 : i32 to vector<9x36xi32>
    %69 = arith.subi %68, %43 : vector<9x36xi32>
    %c2_i32_16 = arith.constant 2 : i32
    %70 = vector.broadcast %c2_i32_16 : i32 to vector<9x36xi32>
    %71 = arith.cmpi eq, %50, %70 : vector<9x36xi32>
    %c2_i32_17 = arith.constant 2 : i32
    %72 = vector.broadcast %c2_i32_17 : i32 to vector<9x36xi32>
    %73 = arith.subi %72, %46 : vector<9x36xi32>
    %74 = arith.select %71, %73, %43 : vector<9x36xi1>, vector<9x36xi32>
    %75 = arith.select %67, %69, %74 : vector<9x36xi1>, vector<9x36xi32>
    %76 = arith.select %65, %46, %75 : vector<9x36xi1>, vector<9x36xi32>
    %c3_i32_18 = arith.constant 3 : i32
    %77 = vector.broadcast %c3_i32_18 : i32 to vector<9x36xi32>
    %78 = arith.muli %63, %77 : vector<9x36xi32>
    %79 = arith.addi %78, %76 : vector<9x36xi32>
    %80 = arith.cmpi eq, %19, %79 : vector<9x36xi32>
    %cst_19 = arith.constant 2.500000e-01 : f32
    %cst_20 = arith.constant 0.000000e+00 : f32
    %81 = vector.broadcast %cst_19 : f32 to vector<9x36xf32>
    %82 = vector.broadcast %cst_20 : f32 to vector<9x36xf32>
    %83 = arith.select %80, %81, %82 : vector<9x36xi1>, vector<9x36xf32>
    %84 = vector.extract_strided_slice %17 {offsets = [0, 0], sizes = [8, 9], strides = [1, 1]} : vector<32x9xf32> to vector<8x9xf32>
    %cst_21 = arith.constant dense<0.000000e+00> : vector<8x36xf32>
    %85 = tpu.matmul %84, %83, %cst_21 {dimension_numbers = #tpu.dot_dimension_numbers<[1], [0], [0], [1], [0, 0, 1, 1], [], []>, precision = #tpu.contract_precision<fp32>} : vector<8x9xf32>, vector<9x36xf32>, vector<8x36xf32> -> vector<8x36xf32>
    %86 = arith.addf %18, %85 : vector<8x36xf32>
    %87 = tpu.iota {dimensions = array<i32: 0>} : vector<9x36xi32>
    %88 = tpu.iota {dimensions = array<i32: 1>} : vector<9x36xi32>
    %c9_i32_22 = arith.constant 9 : i32
    %89 = vector.broadcast %c9_i32_22 : i32 to vector<9x36xi32>
    %90 = arith.cmpi sge, %88, %89 : vector<9x36xi32>
    %91 = arith.extui %90 : vector<9x36xi1> to vector<9x36xi32>
    %c18_i32_23 = arith.constant 18 : i32
    %92 = vector.broadcast %c18_i32_23 : i32 to vector<9x36xi32>
    %93 = arith.cmpi sge, %88, %92 : vector<9x36xi32>
    %94 = arith.extui %93 : vector<9x36xi1> to vector<9x36xi32>
    %95 = arith.addi %91, %94 : vector<9x36xi32>
    %c27_i32_24 = arith.constant 27 : i32
    %96 = vector.broadcast %c27_i32_24 : i32 to vector<9x36xi32>
    %97 = arith.cmpi sge, %88, %96 : vector<9x36xi32>
    %98 = arith.extui %97 : vector<9x36xi1> to vector<9x36xi32>
    %99 = arith.addi %95, %98 : vector<9x36xi32>
    %c9_i32_25 = arith.constant 9 : i32
    %100 = vector.broadcast %c9_i32_25 : i32 to vector<9x36xi32>
    %101 = arith.muli %99, %100 : vector<9x36xi32>
    %102 = arith.subi %88, %101 : vector<9x36xi32>
    %c0_i32_26 = arith.constant 0 : i32
    %103 = vector.broadcast %c0_i32_26 : i32 to vector<9x36xi32>
    %c3_i32_27 = arith.constant 3 : i32
    %104 = vector.broadcast %c3_i32_27 : i32 to vector<9x36xi32>
    %105 = arith.cmpi sge, %102, %104 : vector<9x36xi32>
    %106 = arith.extui %105 : vector<9x36xi1> to vector<9x36xi32>
    %107 = arith.addi %103, %106 : vector<9x36xi32>
    %c6_i32_28 = arith.constant 6 : i32
    %108 = vector.broadcast %c6_i32_28 : i32 to vector<9x36xi32>
    %109 = arith.cmpi sge, %102, %108 : vector<9x36xi32>
    %110 = arith.extui %109 : vector<9x36xi1> to vector<9x36xi32>
    %111 = arith.addi %107, %110 : vector<9x36xi32>
    %c3_i32_29 = arith.constant 3 : i32
    %112 = vector.broadcast %c3_i32_29 : i32 to vector<9x36xi32>
    %113 = arith.muli %111, %112 : vector<9x36xi32>
    %114 = arith.subi %102, %113 : vector<9x36xi32>
    %c5_i32 = arith.constant 5 : i32
    %115 = vector.broadcast %c5_i32 : i32 to vector<9x36xi32>
    %116 = arith.subi %115, %99 : vector<9x36xi32>
    %c3_i32_30 = arith.constant 3 : i32
    %117 = vector.broadcast %c3_i32_30 : i32 to vector<9x36xi32>
    %118 = arith.andi %116, %117 : vector<9x36xi32>
    %c0_i32_31 = arith.constant 0 : i32
    %119 = vector.broadcast %c0_i32_31 : i32 to vector<9x36xi32>
    %120 = arith.cmpi eq, %118, %119 : vector<9x36xi32>
    %c1_i32_32 = arith.constant 1 : i32
    %121 = vector.broadcast %c1_i32_32 : i32 to vector<9x36xi32>
    %122 = arith.cmpi eq, %118, %121 : vector<9x36xi32>
    %c2_i32_33 = arith.constant 2 : i32
    %123 = vector.broadcast %c2_i32_33 : i32 to vector<9x36xi32>
    %124 = arith.cmpi eq, %118, %123 : vector<9x36xi32>
    %c2_i32_34 = arith.constant 2 : i32
    %125 = vector.broadcast %c2_i32_34 : i32 to vector<9x36xi32>
    %126 = arith.subi %125, %111 : vector<9x36xi32>
    %c2_i32_35 = arith.constant 2 : i32
    %127 = vector.broadcast %c2_i32_35 : i32 to vector<9x36xi32>
    %128 = arith.subi %127, %114 : vector<9x36xi32>
    %129 = arith.select %124, %126, %128 : vector<9x36xi1>, vector<9x36xi32>
    %130 = arith.select %122, %114, %129 : vector<9x36xi1>, vector<9x36xi32>
    %131 = arith.select %120, %111, %130 : vector<9x36xi1>, vector<9x36xi32>
    %c0_i32_36 = arith.constant 0 : i32
    %132 = vector.broadcast %c0_i32_36 : i32 to vector<9x36xi32>
    %133 = arith.cmpi eq, %118, %132 : vector<9x36xi32>
    %c1_i32_37 = arith.constant 1 : i32
    %134 = vector.broadcast %c1_i32_37 : i32 to vector<9x36xi32>
    %135 = arith.cmpi eq, %118, %134 : vector<9x36xi32>
    %c2_i32_38 = arith.constant 2 : i32
    %136 = vector.broadcast %c2_i32_38 : i32 to vector<9x36xi32>
    %137 = arith.subi %136, %111 : vector<9x36xi32>
    %c2_i32_39 = arith.constant 2 : i32
    %138 = vector.broadcast %c2_i32_39 : i32 to vector<9x36xi32>
    %139 = arith.cmpi eq, %118, %138 : vector<9x36xi32>
    %c2_i32_40 = arith.constant 2 : i32
    %140 = vector.broadcast %c2_i32_40 : i32 to vector<9x36xi32>
    %141 = arith.subi %140, %114 : vector<9x36xi32>
    %142 = arith.select %139, %141, %111 : vector<9x36xi1>, vector<9x36xi32>
    %143 = arith.select %135, %137, %142 : vector<9x36xi1>, vector<9x36xi32>
    %144 = arith.select %133, %114, %143 : vector<9x36xi1>, vector<9x36xi32>
    %c3_i32_41 = arith.constant 3 : i32
    %145 = vector.broadcast %c3_i32_41 : i32 to vector<9x36xi32>
    %146 = arith.muli %131, %145 : vector<9x36xi32>
    %147 = arith.addi %146, %144 : vector<9x36xi32>
    %148 = arith.cmpi eq, %87, %147 : vector<9x36xi32>
    %cst_42 = arith.constant 2.500000e-01 : f32
    %cst_43 = arith.constant 0.000000e+00 : f32
    %149 = vector.broadcast %cst_42 : f32 to vector<9x36xf32>
    %150 = vector.broadcast %cst_43 : f32 to vector<9x36xf32>
    %151 = arith.select %148, %149, %150 : vector<9x36xi1>, vector<9x36xf32>
    %152 = vector.extract_strided_slice %17 {offsets = [8, 0], sizes = [8, 9], strides = [1, 1]} : vector<32x9xf32> to vector<8x9xf32>
    %cst_44 = arith.constant dense<0.000000e+00> : vector<8x36xf32>
    %153 = tpu.matmul %152, %151, %cst_44 {dimension_numbers = #tpu.dot_dimension_numbers<[1], [0], [0], [1], [0, 0, 1, 1], [], []>, precision = #tpu.contract_precision<fp32>} : vector<8x9xf32>, vector<9x36xf32>, vector<8x36xf32> -> vector<8x36xf32>
    %154 = arith.addf %86, %153 : vector<8x36xf32>
    %155 = tpu.iota {dimensions = array<i32: 0>} : vector<9x36xi32>
    %156 = tpu.iota {dimensions = array<i32: 1>} : vector<9x36xi32>
    %c9_i32_45 = arith.constant 9 : i32
    %157 = vector.broadcast %c9_i32_45 : i32 to vector<9x36xi32>
    %158 = arith.cmpi sge, %156, %157 : vector<9x36xi32>
    %159 = arith.extui %158 : vector<9x36xi1> to vector<9x36xi32>
    %c18_i32_46 = arith.constant 18 : i32
    %160 = vector.broadcast %c18_i32_46 : i32 to vector<9x36xi32>
    %161 = arith.cmpi sge, %156, %160 : vector<9x36xi32>
    %162 = arith.extui %161 : vector<9x36xi1> to vector<9x36xi32>
    %163 = arith.addi %159, %162 : vector<9x36xi32>
    %c27_i32_47 = arith.constant 27 : i32
    %164 = vector.broadcast %c27_i32_47 : i32 to vector<9x36xi32>
    %165 = arith.cmpi sge, %156, %164 : vector<9x36xi32>
    %166 = arith.extui %165 : vector<9x36xi1> to vector<9x36xi32>
    %167 = arith.addi %163, %166 : vector<9x36xi32>
    %c9_i32_48 = arith.constant 9 : i32
    %168 = vector.broadcast %c9_i32_48 : i32 to vector<9x36xi32>
    %169 = arith.muli %167, %168 : vector<9x36xi32>
    %170 = arith.subi %156, %169 : vector<9x36xi32>
    %c0_i32_49 = arith.constant 0 : i32
    %171 = vector.broadcast %c0_i32_49 : i32 to vector<9x36xi32>
    %c3_i32_50 = arith.constant 3 : i32
    %172 = vector.broadcast %c3_i32_50 : i32 to vector<9x36xi32>
    %173 = arith.cmpi sge, %170, %172 : vector<9x36xi32>
    %174 = arith.extui %173 : vector<9x36xi1> to vector<9x36xi32>
    %175 = arith.addi %171, %174 : vector<9x36xi32>
    %c6_i32_51 = arith.constant 6 : i32
    %176 = vector.broadcast %c6_i32_51 : i32 to vector<9x36xi32>
    %177 = arith.cmpi sge, %170, %176 : vector<9x36xi32>
    %178 = arith.extui %177 : vector<9x36xi1> to vector<9x36xi32>
    %179 = arith.addi %175, %178 : vector<9x36xi32>
    %c3_i32_52 = arith.constant 3 : i32
    %180 = vector.broadcast %c3_i32_52 : i32 to vector<9x36xi32>
    %181 = arith.muli %179, %180 : vector<9x36xi32>
    %182 = arith.subi %170, %181 : vector<9x36xi32>
    %c6_i32_53 = arith.constant 6 : i32
    %183 = vector.broadcast %c6_i32_53 : i32 to vector<9x36xi32>
    %184 = arith.subi %183, %167 : vector<9x36xi32>
    %c3_i32_54 = arith.constant 3 : i32
    %185 = vector.broadcast %c3_i32_54 : i32 to vector<9x36xi32>
    %186 = arith.andi %184, %185 : vector<9x36xi32>
    %c0_i32_55 = arith.constant 0 : i32
    %187 = vector.broadcast %c0_i32_55 : i32 to vector<9x36xi32>
    %188 = arith.cmpi eq, %186, %187 : vector<9x36xi32>
    %c1_i32_56 = arith.constant 1 : i32
    %189 = vector.broadcast %c1_i32_56 : i32 to vector<9x36xi32>
    %190 = arith.cmpi eq, %186, %189 : vector<9x36xi32>
    %c2_i32_57 = arith.constant 2 : i32
    %191 = vector.broadcast %c2_i32_57 : i32 to vector<9x36xi32>
    %192 = arith.cmpi eq, %186, %191 : vector<9x36xi32>
    %c2_i32_58 = arith.constant 2 : i32
    %193 = vector.broadcast %c2_i32_58 : i32 to vector<9x36xi32>
    %194 = arith.subi %193, %179 : vector<9x36xi32>
    %c2_i32_59 = arith.constant 2 : i32
    %195 = vector.broadcast %c2_i32_59 : i32 to vector<9x36xi32>
    %196 = arith.subi %195, %182 : vector<9x36xi32>
    %197 = arith.select %192, %194, %196 : vector<9x36xi1>, vector<9x36xi32>
    %198 = arith.select %190, %182, %197 : vector<9x36xi1>, vector<9x36xi32>
    %199 = arith.select %188, %179, %198 : vector<9x36xi1>, vector<9x36xi32>
    %c0_i32_60 = arith.constant 0 : i32
    %200 = vector.broadcast %c0_i32_60 : i32 to vector<9x36xi32>
    %201 = arith.cmpi eq, %186, %200 : vector<9x36xi32>
    %c1_i32_61 = arith.constant 1 : i32
    %202 = vector.broadcast %c1_i32_61 : i32 to vector<9x36xi32>
    %203 = arith.cmpi eq, %186, %202 : vector<9x36xi32>
    %c2_i32_62 = arith.constant 2 : i32
    %204 = vector.broadcast %c2_i32_62 : i32 to vector<9x36xi32>
    %205 = arith.subi %204, %179 : vector<9x36xi32>
    %c2_i32_63 = arith.constant 2 : i32
    %206 = vector.broadcast %c2_i32_63 : i32 to vector<9x36xi32>
    %207 = arith.cmpi eq, %186, %206 : vector<9x36xi32>
    %c2_i32_64 = arith.constant 2 : i32
    %208 = vector.broadcast %c2_i32_64 : i32 to vector<9x36xi32>
    %209 = arith.subi %208, %182 : vector<9x36xi32>
    %210 = arith.select %207, %209, %179 : vector<9x36xi1>, vector<9x36xi32>
    %211 = arith.select %203, %205, %210 : vector<9x36xi1>, vector<9x36xi32>
    %212 = arith.select %201, %182, %211 : vector<9x36xi1>, vector<9x36xi32>
    %c3_i32_65 = arith.constant 3 : i32
    %213 = vector.broadcast %c3_i32_65 : i32 to vector<9x36xi32>
    %214 = arith.muli %199, %213 : vector<9x36xi32>
    %215 = arith.addi %214, %212 : vector<9x36xi32>
    %216 = arith.cmpi eq, %155, %215 : vector<9x36xi32>
    %cst_66 = arith.constant 2.500000e-01 : f32
    %cst_67 = arith.constant 0.000000e+00 : f32
    %217 = vector.broadcast %cst_66 : f32 to vector<9x36xf32>
    %218 = vector.broadcast %cst_67 : f32 to vector<9x36xf32>
    %219 = arith.select %216, %217, %218 : vector<9x36xi1>, vector<9x36xf32>
    %220 = vector.extract_strided_slice %17 {offsets = [16, 0], sizes = [8, 9], strides = [1, 1]} : vector<32x9xf32> to vector<8x9xf32>
    %cst_68 = arith.constant dense<0.000000e+00> : vector<8x36xf32>
    %221 = tpu.matmul %220, %219, %cst_68 {dimension_numbers = #tpu.dot_dimension_numbers<[1], [0], [0], [1], [0, 0, 1, 1], [], []>, precision = #tpu.contract_precision<fp32>} : vector<8x9xf32>, vector<9x36xf32>, vector<8x36xf32> -> vector<8x36xf32>
    %222 = arith.addf %154, %221 : vector<8x36xf32>
    %223 = tpu.iota {dimensions = array<i32: 0>} : vector<9x36xi32>
    %224 = tpu.iota {dimensions = array<i32: 1>} : vector<9x36xi32>
    %c9_i32_69 = arith.constant 9 : i32
    %225 = vector.broadcast %c9_i32_69 : i32 to vector<9x36xi32>
    %226 = arith.cmpi sge, %224, %225 : vector<9x36xi32>
    %227 = arith.extui %226 : vector<9x36xi1> to vector<9x36xi32>
    %c18_i32_70 = arith.constant 18 : i32
    %228 = vector.broadcast %c18_i32_70 : i32 to vector<9x36xi32>
    %229 = arith.cmpi sge, %224, %228 : vector<9x36xi32>
    %230 = arith.extui %229 : vector<9x36xi1> to vector<9x36xi32>
    %231 = arith.addi %227, %230 : vector<9x36xi32>
    %c27_i32_71 = arith.constant 27 : i32
    %232 = vector.broadcast %c27_i32_71 : i32 to vector<9x36xi32>
    %233 = arith.cmpi sge, %224, %232 : vector<9x36xi32>
    %234 = arith.extui %233 : vector<9x36xi1> to vector<9x36xi32>
    %235 = arith.addi %231, %234 : vector<9x36xi32>
    %c9_i32_72 = arith.constant 9 : i32
    %236 = vector.broadcast %c9_i32_72 : i32 to vector<9x36xi32>
    %237 = arith.muli %235, %236 : vector<9x36xi32>
    %238 = arith.subi %224, %237 : vector<9x36xi32>
    %c0_i32_73 = arith.constant 0 : i32
    %239 = vector.broadcast %c0_i32_73 : i32 to vector<9x36xi32>
    %c3_i32_74 = arith.constant 3 : i32
    %240 = vector.broadcast %c3_i32_74 : i32 to vector<9x36xi32>
    %241 = arith.cmpi sge, %238, %240 : vector<9x36xi32>
    %242 = arith.extui %241 : vector<9x36xi1> to vector<9x36xi32>
    %243 = arith.addi %239, %242 : vector<9x36xi32>
    %c6_i32_75 = arith.constant 6 : i32
    %244 = vector.broadcast %c6_i32_75 : i32 to vector<9x36xi32>
    %245 = arith.cmpi sge, %238, %244 : vector<9x36xi32>
    %246 = arith.extui %245 : vector<9x36xi1> to vector<9x36xi32>
    %247 = arith.addi %243, %246 : vector<9x36xi32>
    %c3_i32_76 = arith.constant 3 : i32
    %248 = vector.broadcast %c3_i32_76 : i32 to vector<9x36xi32>
    %249 = arith.muli %247, %248 : vector<9x36xi32>
    %250 = arith.subi %238, %249 : vector<9x36xi32>
    %c7_i32 = arith.constant 7 : i32
    %251 = vector.broadcast %c7_i32 : i32 to vector<9x36xi32>
    %252 = arith.subi %251, %235 : vector<9x36xi32>
    %c3_i32_77 = arith.constant 3 : i32
    %253 = vector.broadcast %c3_i32_77 : i32 to vector<9x36xi32>
    %254 = arith.andi %252, %253 : vector<9x36xi32>
    %c0_i32_78 = arith.constant 0 : i32
    %255 = vector.broadcast %c0_i32_78 : i32 to vector<9x36xi32>
    %256 = arith.cmpi eq, %254, %255 : vector<9x36xi32>
    %c1_i32_79 = arith.constant 1 : i32
    %257 = vector.broadcast %c1_i32_79 : i32 to vector<9x36xi32>
    %258 = arith.cmpi eq, %254, %257 : vector<9x36xi32>
    %c2_i32_80 = arith.constant 2 : i32
    %259 = vector.broadcast %c2_i32_80 : i32 to vector<9x36xi32>
    %260 = arith.cmpi eq, %254, %259 : vector<9x36xi32>
    %c2_i32_81 = arith.constant 2 : i32
    %261 = vector.broadcast %c2_i32_81 : i32 to vector<9x36xi32>
    %262 = arith.subi %261, %247 : vector<9x36xi32>
    %c2_i32_82 = arith.constant 2 : i32
    %263 = vector.broadcast %c2_i32_82 : i32 to vector<9x36xi32>
    %264 = arith.subi %263, %250 : vector<9x36xi32>
    %265 = arith.select %260, %262, %264 : vector<9x36xi1>, vector<9x36xi32>
    %266 = arith.select %258, %250, %265 : vector<9x36xi1>, vector<9x36xi32>
    %267 = arith.select %256, %247, %266 : vector<9x36xi1>, vector<9x36xi32>
    %c0_i32_83 = arith.constant 0 : i32
    %268 = vector.broadcast %c0_i32_83 : i32 to vector<9x36xi32>
    %269 = arith.cmpi eq, %254, %268 : vector<9x36xi32>
    %c1_i32_84 = arith.constant 1 : i32
    %270 = vector.broadcast %c1_i32_84 : i32 to vector<9x36xi32>
    %271 = arith.cmpi eq, %254, %270 : vector<9x36xi32>
    %c2_i32_85 = arith.constant 2 : i32
    %272 = vector.broadcast %c2_i32_85 : i32 to vector<9x36xi32>
    %273 = arith.subi %272, %247 : vector<9x36xi32>
    %c2_i32_86 = arith.constant 2 : i32
    %274 = vector.broadcast %c2_i32_86 : i32 to vector<9x36xi32>
    %275 = arith.cmpi eq, %254, %274 : vector<9x36xi32>
    %c2_i32_87 = arith.constant 2 : i32
    %276 = vector.broadcast %c2_i32_87 : i32 to vector<9x36xi32>
    %277 = arith.subi %276, %250 : vector<9x36xi32>
    %278 = arith.select %275, %277, %247 : vector<9x36xi1>, vector<9x36xi32>
    %279 = arith.select %271, %273, %278 : vector<9x36xi1>, vector<9x36xi32>
    %280 = arith.select %269, %250, %279 : vector<9x36xi1>, vector<9x36xi32>
    %c3_i32_88 = arith.constant 3 : i32
    %281 = vector.broadcast %c3_i32_88 : i32 to vector<9x36xi32>
    %282 = arith.muli %267, %281 : vector<9x36xi32>
    %283 = arith.addi %282, %280 : vector<9x36xi32>
    %284 = arith.cmpi eq, %223, %283 : vector<9x36xi32>
    %cst_89 = arith.constant 2.500000e-01 : f32
    %cst_90 = arith.constant 0.000000e+00 : f32
    %285 = vector.broadcast %cst_89 : f32 to vector<9x36xf32>
    %286 = vector.broadcast %cst_90 : f32 to vector<9x36xf32>
    %287 = arith.select %284, %285, %286 : vector<9x36xi1>, vector<9x36xf32>
    %288 = vector.extract_strided_slice %17 {offsets = [24, 0], sizes = [8, 9], strides = [1, 1]} : vector<32x9xf32> to vector<8x9xf32>
    %cst_91 = arith.constant dense<0.000000e+00> : vector<8x36xf32>
    %289 = tpu.matmul %288, %287, %cst_91 {dimension_numbers = #tpu.dot_dimension_numbers<[1], [0], [0], [1], [0, 0, 1, 1], [], []>, precision = #tpu.contract_precision<fp32>} : vector<8x9xf32>, vector<9x36xf32>, vector<8x36xf32> -> vector<8x36xf32>
    %290 = arith.addf %222, %289 : vector<8x36xf32>
    %291 = tpu.iota {dimensions = array<i32: 0>} : vector<8x1xi32>
    %c0_i32_92 = arith.constant 0 : i32
    %292 = vector.broadcast %c0_i32_92 : i32 to vector<8x1xi32>
    %c4_i32_93 = arith.constant 4 : i32
    %293 = vector.broadcast %c4_i32_93 : i32 to vector<8x1xi32>
    %294 = arith.cmpi sge, %291, %293 : vector<8x1xi32>
    %295 = arith.extui %294 : vector<8x1xi1> to vector<8x1xi32>
    %296 = arith.addi %292, %295 : vector<8x1xi32>
    %c4_i32_94 = arith.constant 4 : i32
    %297 = vector.broadcast %c4_i32_94 : i32 to vector<8x1xi32>
    %298 = arith.muli %296, %297 : vector<8x1xi32>
    %299 = arith.subi %291, %298 : vector<8x1xi32>
    %cst_95 = arith.constant 0.000000e+00 : f32
    %300 = vector.broadcast %cst_95 : f32 to vector<8x1xf32>
    %cst_96 = arith.constant 0.000000e+00 : f32
    %301 = vector.broadcast %cst_96 : f32 to vector<8x1xf32>
    %c0_i32_97 = arith.constant 0 : i32
    %302 = vector.broadcast %c0_i32_97 : i32 to vector<8x1xi32>
    %303 = arith.cmpi eq, %299, %302 : vector<8x1xi32>
    %304 = arith.index_cast %arg0 : i32 to index
    %c0_98 = arith.constant 0 : index
    %c0_99 = arith.constant 0 : index
    %305 = memref.load %arg1[%304, %c0_98, %c0_99] : memref<8x2x4xf32, #tpu.memory_space<smem>>
    %306 = vector.broadcast %305 : f32 to vector<8x1xf32>
    %307 = arith.select %303, %306, %300 : vector<8x1xi1>, vector<8x1xf32>
    %308 = arith.index_cast %arg0 : i32 to index
    %c1 = arith.constant 1 : index
    %c0_100 = arith.constant 0 : index
    %309 = memref.load %arg1[%308, %c1, %c0_100] : memref<8x2x4xf32, #tpu.memory_space<smem>>
    %310 = vector.broadcast %309 : f32 to vector<8x1xf32>
    %311 = arith.select %303, %310, %301 : vector<8x1xi1>, vector<8x1xf32>
    %c1_i32_101 = arith.constant 1 : i32
    %312 = vector.broadcast %c1_i32_101 : i32 to vector<8x1xi32>
    %313 = arith.cmpi eq, %299, %312 : vector<8x1xi32>
    %314 = arith.index_cast %arg0 : i32 to index
    %c0_102 = arith.constant 0 : index
    %c1_103 = arith.constant 1 : index
    %315 = memref.load %arg1[%314, %c0_102, %c1_103] : memref<8x2x4xf32, #tpu.memory_space<smem>>
    %316 = vector.broadcast %315 : f32 to vector<8x1xf32>
    %317 = arith.select %313, %316, %307 : vector<8x1xi1>, vector<8x1xf32>
    %318 = arith.index_cast %arg0 : i32 to index
    %c1_104 = arith.constant 1 : index
    %c1_105 = arith.constant 1 : index
    %319 = memref.load %arg1[%318, %c1_104, %c1_105] : memref<8x2x4xf32, #tpu.memory_space<smem>>
    %320 = vector.broadcast %319 : f32 to vector<8x1xf32>
    %321 = arith.select %313, %320, %311 : vector<8x1xi1>, vector<8x1xf32>
    %c2_i32_106 = arith.constant 2 : i32
    %322 = vector.broadcast %c2_i32_106 : i32 to vector<8x1xi32>
    %323 = arith.cmpi eq, %299, %322 : vector<8x1xi32>
    %324 = arith.index_cast %arg0 : i32 to index
    %c0_107 = arith.constant 0 : index
    %c2 = arith.constant 2 : index
    %325 = memref.load %arg1[%324, %c0_107, %c2] : memref<8x2x4xf32, #tpu.memory_space<smem>>
    %326 = vector.broadcast %325 : f32 to vector<8x1xf32>
    %327 = arith.select %323, %326, %317 : vector<8x1xi1>, vector<8x1xf32>
    %328 = arith.index_cast %arg0 : i32 to index
    %c1_108 = arith.constant 1 : index
    %c2_109 = arith.constant 2 : index
    %329 = memref.load %arg1[%328, %c1_108, %c2_109] : memref<8x2x4xf32, #tpu.memory_space<smem>>
    %330 = vector.broadcast %329 : f32 to vector<8x1xf32>
    %331 = arith.select %323, %330, %321 : vector<8x1xi1>, vector<8x1xf32>
    %c3_i32_110 = arith.constant 3 : i32
    %332 = vector.broadcast %c3_i32_110 : i32 to vector<8x1xi32>
    %333 = arith.cmpi eq, %299, %332 : vector<8x1xi32>
    %334 = arith.index_cast %arg0 : i32 to index
    %c0_111 = arith.constant 0 : index
    %c3 = arith.constant 3 : index
    %335 = memref.load %arg1[%334, %c0_111, %c3] : memref<8x2x4xf32, #tpu.memory_space<smem>>
    %336 = vector.broadcast %335 : f32 to vector<8x1xf32>
    %337 = arith.select %333, %336, %327 : vector<8x1xi1>, vector<8x1xf32>
    %338 = arith.index_cast %arg0 : i32 to index
    %c1_112 = arith.constant 1 : index
    %c3_113 = arith.constant 3 : index
    %339 = memref.load %arg1[%338, %c1_112, %c3_113] : memref<8x2x4xf32, #tpu.memory_space<smem>>
    %340 = vector.broadcast %339 : f32 to vector<8x1xf32>
    %341 = arith.select %333, %340, %331 : vector<8x1xi1>, vector<8x1xf32>
    %342 = vector.broadcast %337 : vector<8x1xf32> to vector<8x36xf32>
    %343 = arith.mulf %290, %342 : vector<8x36xf32>
    %344 = vector.broadcast %341 : vector<8x1xf32> to vector<8x36xf32>
    %345 = arith.addf %343, %344 : vector<8x36xf32>
    %c0_114 = arith.constant 0 : index
    %c0_115 = arith.constant 0 : index
    %c0_116 = arith.constant 0 : index
    %346 = vector.load %arg3[%c0_114, %c0_115, %c0_116] : memref<1x8x36xf32, #tpu.memory_space<vmem>>, vector<1x8x36xf32>
    %347 = vector.shape_cast %346 : vector<1x8x36xf32> to vector<8x36xf32>
    %348 = vector.shape_cast %345 : vector<8x36xf32> to vector<1x8x36xf32>
    tpu.vector_store %arg3[%c0_114, %c0_115, %c0_116], %348 {strides = array<i32>} : memref<1x8x36xf32, #tpu.memory_space<vmem>>, vector<1x8x36xf32>,
    return
  }
  func.func @transform_0(%arg0: i32, %arg1: memref<8x2x4xf32, #tpu.memory_space<smem>>) -> (i32, i32, i32) {
    %c0_i32 = arith.constant 0 : i32
    %c0_i32_0 = arith.constant 0 : i32
    %c0_i32_1 = arith.constant 0 : i32
    return %arg0, %c0_i32, %c0_i32_0 : i32, i32, i32
  }
  func.func @transform_1(%arg0: i32, %arg1: memref<8x2x4xf32, #tpu.memory_space<smem>>) -> (i32, i32, i32) {
    %c0_i32 = arith.constant 0 : i32
    %c0_i32_0 = arith.constant 0 : i32
    %c0_i32_1 = arith.constant 0 : i32
    return %arg0, %c0_i32, %c0_i32_0 : i32, i32, i32
  }
}

</mosaic_0001>

<llo_original>
// kernel: tpu_custom_call.1
$region0: #{tpu_custom_call.1}
  #allocation0 [shape = 'u32[]', space=smem, size = 0x4, offset = 0x4, fixed_abs, tag = 'smem constant byte address 0x4 - core index']
  #allocation1 [shape = 'u32[72,128]{1,0:T(1,128)}', space=vmem, size = 0x9000, scoped, tag = 'internal scratch']
  #allocation2 [shape = 's32[1]{0}', space=sflag, size = 0x4, scoped, tag = 'scoped memory for tpu_custom_call.1']
  #allocation3 [shape = 'u8[8192]{0}', space=smem, size = 0x2000, scoped, tag = 'prefetched SMEM operand 0']
  %s0 = inlined_call_operand.vmem [shape: f32[8,2,4], index: 0, kind: input, shape index: {}]
  %s1 = inlined_call_operand.vmem [shape: f32[8,32,9], index: 1, kind: input, shape index: {}]
  %s2 = inlined_call_operand.hbm [shape: f32[8,8,36], index: 2, kind: output, shape index: {}]
  %s3 = sld [smem:[#allocation0]]
  $region37: #{tpu_custom_call.1} parent=0
    _
  %s5 = ssub.s32 1, %s3
  %s6 = scalar_select 0, %s5, %s3
  %s8 = sshll.u32 %s0, 4
  %s9 = int_to_ptr.vmem [resolvable:$true] %s8
  %11 = dma.vmem_to_smem %s9, 256, [#allocation3], [#allocation2]
  %13 = dma.done [#allocation2], 256
  %14 = sfence
  $region1: #{tpu_custom_call.1} parent=0
    #allocation4 [shape = 'u8[8192]{0}', space=vmem, size = 0x2000, scoped, tag = 'output window, operand 0']
    #allocation5 [shape = 's32[2]{0}', space=sflag, size = 0x8, scoped, tag = 'scoped memory for tpu_custom_call.1']
    %15 = vsyncpa [#allocation5], 0
    %s16 = scalar_lea.sflag [#allocation5], 1
    %17 = vsyncpa %s16, 0
    loop: start=0, step=1, limit=10
    $region2: #{tpu_custom_call.1} parent=1 // loop_pre_header
      _
    $region3: #{tpu_custom_call.1} parent=1 // loop_header
      %s19 = sphi 0, %s23
      %p20 = scmp.ge.s32.totalorder %s19, 10
      %s29 = sphi 0, %s31
      %s32 = sphi 0, %s29
      %s33 = sphi 0, %s32
      %s49 = sphi 0, %s33
      %s55 = sphi 0, %s57
      %s58 = sphi 0, %s55
      %s59 = sphi 0, %s58
      %s75 = sphi 0, %s59
    $region4: #{tpu_custom_call.1} parent=1 // loop_header_branch
      %22 = sbr.rel (%p20) target = $region8
    $region5: #{tpu_custom_call.1} parent=1 // loop_body
      %s24 = ssub.s32 %s19, 1
      %s25 = ssub.s32 %s19, 2
      %s26 = sadd.s32 %s19, 1
      %s27 = ssub.s32 %s19, %s26
      %p28 = scmp.eq.s32.totalorder %s27, 0
      %s30 = sadd.s32 %s29, 1
      %s31 = scalar_select %p28, %s29, %s30
      %p34 = pneg %p28
      %p35 = scmp.eq.s32.totalorder %s19, 7
      %p36 = por %p34, %p35
      %p37 = scmp.ne.s32.totalorder %s29, %s32
      %p38 = scmp.eq.s32.totalorder %s19, 0
      %p39 = por %p37, %p38
      %p40 = scmp.ne.s32.totalorder %s29, %s32
      %p41 = scmp.eq.s32.totalorder %s24, 7
      %p42 = por %p40, %p41
      %p43 = scmp.ne.s32.totalorder %s32, %s33
      %p44 = scmp.eq.s32.totalorder %s24, 0
      %p45 = por %p43, %p44
      %p46 = scmp.ne.s32.totalorder %s32, %s33
      %p47 = scmp.eq.s32.totalorder %s25, 7
      %p48 = por %p46, %p47
      %p50 = scmp.ne.s32.totalorder %s33, %s49
      %p51 = scmp.eq.s32.totalorder %s25, 0
      %p52 = por %p50, %p51
      %s53 = ssub.s32 %s19, %s26
      %p54 = scmp.eq.s32.totalorder %s53, 0
      %s56 = sadd.s32 %s55, 1
      %s57 = scalar_select %p54, %s55, %s56
      %p60 = pneg %p54
      %p61 = scmp.eq.s32.totalorder %s19, 7
      %p62 = por %p60, %p61
      %p63 = scmp.ne.s32.totalorder %s55, %s58
      %p64 = scmp.eq.s32.totalorder %s19, 0
      %p65 = por %p63, %p64
      %p66 = scmp.ne.s32.totalorder %s55, %s58
      %p67 = scmp.eq.s32.totalorder %s24, 7
      %p68 = por %p66, %p67
      %p69 = scmp.ne.s32.totalorder %s58, %s59
      %p70 = scmp.eq.s32.totalorder %s24, 0
      %p71 = por %p69, %p70
      %p72 = scmp.ne.s32.totalorder %s58, %s59
      %p73 = scmp.eq.s32.totalorder %s25, 7
      %p74 = por %p72, %p73
      %p76 = scmp.ne.s32.totalorder %s59, %s75
      %p77 = scmp.eq.s32.totalorder %s25, 0
      %p78 = por %p76, %p77
      %p79 = scmp.le.s32.totalorder 1, %s19
      %p80 = scmp.lt.s32.totalorder %s19, 9
      %p81 = pnand %p79, %p80
      %p82 = pneg %p81
      // Predicated region
      $region9: #{tpu_custom_call.1} parent=5 // pred_check
        _
      $region10: #{tpu_custom_call.1} parent=5 // pred_check_branch
        %84 = sbr.rel (%p81) target = $region12
      $region11: #{tpu_custom_call.1} parent=5 // pred_region
        %s85 = ssub.s32 %s19, 1
      $region12: #{tpu_custom_call.1} parent=5 // pred_fallthru
        _
      %p86 = scmp.lt.s32.totalorder %s19, 8
      // Predicated region
      $region13: #{tpu_custom_call.1} parent=5 // pred_check
        %p87 = pneg %p86
      $region14: #{tpu_custom_call.1} parent=5 // pred_check_branch
        %89 = sbr.rel (%p87) target = $region16
      $region15: #{tpu_custom_call.1} parent=5 // pred_region
        // Predicated region
        $region17: #{tpu_custom_call.1} parent=15 // pred_check
          %p90 = pneg %p39
        $region18: #{tpu_custom_call.1} parent=15 // pred_check_branch
          %92 = sbr.rel (%p90) target = $region20
        $region19: #{tpu_custom_call.1} parent=15 // pred_region
          %p93 = scmp.lt.s32.totalorder %s19, 7
          %s94 = scalar_select %p93, %s19, 7
          %s95 = smul.addr %s94, 4
          %s96 = smul.addr %s95, 8
          %s97 = scalar_lea.vmem %s1, %s96
        $region20: #{tpu_custom_call.1} parent=15 // pred_fallthru
          _
      $region16: #{tpu_custom_call.1} parent=5 // pred_fallthru
        _
      %p98 = scmp.le.s32.totalorder 1, %s19
      %p99 = scmp.lt.s32.totalorder %s19, 9
      %p100 = pnand %p98, %p99
      %p101 = pneg %p100
      // Predicated region
      $region21: #{tpu_custom_call.1} parent=5 // pred_check
        _
      $region22: #{tpu_custom_call.1} parent=5 // pred_check_branch
        %103 = sbr.rel (%p100) target = $region24
      $region23: #{tpu_custom_call.1} parent=5 // pred_region
        %s104 = ssub.s32 %s19, 1
        %p105 = scmp.lt.s32.totalorder %s24, 7
        %s106 = scalar_select %p105, %s24, 7
        %s107 = smul.addr %s106, 4
        %s108 = smul.addr %s107, 8
        %s109 = scalar_lea.vmem %s1, %s108
        %p110 = pneg %p45
        %p111 = pneg %p42
        %p112 = pneg %p71
        %p113 = pneg %p68
        %s114 = sand.u32 %s58, 1
        %s115 = scalar_lea.sflag [#allocation5], %s114
        %s116 = sand.u32 %s58, 1
        %s117 = smul.addr %s116, 8
        %s118 = scalar_lea.vmem [#allocation4], %s117
        %p119 = scmp.lt.s32.totalorder %s24, 7
        %s120 = scalar_select %p119, %s24, 7
        %s121 = smul.addr %s120, 4
        %s122 = smul.addr %s121, 8
        %s123 = scalar_lea.vmem %s1, %s122
        %v124 = vld [vmem:[%s123] sm:$0xff]
        %v125 = vld [vmem:[%s123 + $0x8] sm:$0xff]
        %v126 = vld [vmem:[%s123 + $0x10] sm:$0xff]
        %v127 = vld [vmem:[%s123 + $0x18] sm:$0xff]
        %vm128 = vcmask 72704
        %v129 = vsel %vm128, %v124, 0.0
        %130 = vadd.xlane.f32.xlu0 %v129
        %v131 = vpop.xlane.xlu0 %130
        %v132 = vsel %vm128, %v125, 0.0
        %133 = vadd.xlane.f32.xlu0 %v132
        %v134 = vpop.xlane.xlu0 %133
        %v135 = vsel %vm128, %v126, 0.0
        %136 = vadd.xlane.f32.xlu0 %v135
        %v137 = vpop.xlane.xlu0 %136
        %v138 = vsel %vm128, %v127, 0.0
        %139 = vadd.xlane.f32.xlu0 %v138
        %v140 = vpop.xlane.xlu0 %139
        %v141 = vrcp.pop 9.0
        %v142 = vmul.f32 9.0, %v141
        %v143 = vsub.f32 1.0, %v142
        %v144 = vmul.f32 %v141, %v143
        %v145 = vadd.f32 %v141, %v144
        %vm146 = vweird.f32 %v141
        %v147 = vsel %vm146, %v141, %v145
        %v148 = vmul.f32 %v131, %v147
        %v149 = vmul.f32 %v134, %v147
        %v150 = vmul.f32 %v137, %v147
        %v151 = vmul.f32 %v140, %v147
        %v152 = vsub.f32 %v124, %v148
        %v153 = vsub.f32 %v125, %v149
        %v154 = vsub.f32 %v126, %v150
        %v155 = vsub.f32 %v127, %v151
        %v156 = vmul.f32 %v152, %v152
        %v157 = vmul.f32 %v153, %v153
        %v158 = vmul.f32 %v154, %v154
        %v159 = vmul.f32 %v155, %v155
        %v160 = vsel %vm128, %v156, 0.0
        %161 = vadd.xlane.f32.xlu0 %v160
        %v162 = vpop.xlane.xlu0 %161
        %v163 = vsel %vm128, %v157, 0.0
        %164 = vadd.xlane.f32.xlu0 %v163
        %v165 = vpop.xlane.xlu0 %164
        %v166 = vsel %vm128, %v158, 0.0
        %167 = vadd.xlane.f32.xlu0 %v166
        %v168 = vpop.xlane.xlu0 %167
        %v169 = vsel %vm128, %v159, 0.0
        %170 = vadd.xlane.f32.xlu0 %v169
        %v171 = vpop.xlane.xlu0 %170
        %v172 = vmul.f32 %v162, 0.125
        %v173 = vmul.f32 %v165, 0.125
        %v174 = vmul.f32 %v168, 0.125
        %v175 = vmul.f32 %v171, 0.125
        %v176 = vrsqrt.pop %v172
        %v177 = vmul.f32 %v176, %v172
        %v178 = vmul.f32 %v177, %v176
        %v179 = vmul.f32 0.5, %v178
        %v180 = vsub.f32 1.5, %v179
        %v181 = vmul.f32 %v176, %v180
        %v182 = vmul.f32 %v172, %v181
        %vm183 = vcmp.eq.f32.partialorder %v172, inf
        %v184 = vsel %vm183, %v172, %v182
        %vm185 = vcmp.eq.f32.partialorder %v172, 0.0
        %v186 = vand.u32 %v172, 2147483648
        %v187 = vsel %vm185, %v186, %v184
        %v188 = vrsqrt.pop %v173
        %v189 = vmul.f32 %v188, %v173
        %v190 = vmul.f32 %v189, %v188
        %v191 = vmul.f32 0.5, %v190
        %v192 = vsub.f32 1.5, %v191
        %v193 = vmul.f32 %v188, %v192
        %v194 = vmul.f32 %v173, %v193
        %vm195 = vcmp.eq.f32.partialorder %v173, inf
        %v196 = vsel %vm195, %v173, %v194
        %vm197 = vcmp.eq.f32.partialorder %v173, 0.0
        %v198 = vand.u32 %v173, 2147483648
        %v199 = vsel %vm197, %v198, %v196
        %v200 = vrsqrt.pop %v174
        %v201 = vmul.f32 %v200, %v174
        %v202 = vmul.f32 %v201, %v200
        %v203 = vmul.f32 0.5, %v202
        %v204 = vsub.f32 1.5, %v203
        %v205 = vmul.f32 %v200, %v204
        %v206 = vmul.f32 %v174, %v205
        %vm207 = vcmp.eq.f32.partialorder %v174, inf
        %v208 = vsel %vm207, %v174, %v206
        %vm209 = vcmp.eq.f32.partialorder %v174, 0.0
        %v210 = vand.u32 %v174, 2147483648
        %v211 = vsel %vm209, %v210, %v208
        %v212 = vrsqrt.pop %v175
        %v213 = vmul.f32 %v212, %v175
        %v214 = vmul.f32 %v213, %v212
        %v215 = vmul.f32 0.5, %v214
        %v216 = vsub.f32 1.5, %v215
        %v217 = vmul.f32 %v212, %v216
        %v218 = vmul.f32 %v175, %v217
        %vm219 = vcmp.eq.f32.partialorder %v175, inf
        %v220 = vsel %vm219, %v175, %v218
        %vm221 = vcmp.eq.f32.partialorder %v175, 0.0
        %v222 = vand.u32 %v175, 2147483648
        %v223 = vsel %vm221, %v222, %v220
        %v224 = vadd.f32 %v187, 1e-12
        %v225 = vadd.f32 %v199, 1e-12
        %v226 = vadd.f32 %v211, 1e-12
        %v227 = vadd.f32 %v223, 1e-12
        %v228 = vrcp.pop %v224
        %v229 = vmul.f32 %v224, %v228
        %v230 = vsub.f32 1.0, %v229
        %v231 = vmul.f32 %v228, %v230
        %v232 = vadd.f32 %v228, %v231
        %vm233 = vweird.f32 %v224
        %vm234 = vweird.f32 %v228
        %vm235 = vmor %vm233, %vm234
        %v236 = vsel %vm235, %v228, %v232
        %v237 = vand.u32 2147483647, %v224
        %vm238 = vcmp.eq.f32.partialorder %v237, 8.507059e+37
        %v239 = vand.u32 %v224, 2147483648
        %v240 = vor.u32 1.1754944e-38, %v239
        %v241 = vsel %vm238, %v240, %v236
        %v242 = vmul.f32 %v152, %v241
        %v243 = vrcp.pop %v225
        %v244 = vmul.f32 %v225, %v243
        %v245 = vsub.f32 1.0, %v244
        %v246 = vmul.f32 %v243, %v245
        %v247 = vadd.f32 %v243, %v246
        %vm248 = vweird.f32 %v225
        %vm249 = vweird.f32 %v243
        %vm250 = vmor %vm248, %vm249
        %v251 = vsel %vm250, %v243, %v247
        %v252 = vand.u32 2147483647, %v225
        %vm253 = vcmp.eq.f32.partialorder %v252, 8.507059e+37
        %v254 = vand.u32 %v225, 2147483648
        %v255 = vor.u32 1.1754944e-38, %v254
        %v256 = vsel %vm253, %v255, %v251
        %v257 = vmul.f32 %v153, %v256
        %v258 = vrcp.pop %v226
        %v259 = vmul.f32 %v226, %v258
        %v260 = vsub.f32 1.0, %v259
        %v261 = vmul.f32 %v258, %v260
        %v262 = vadd.f32 %v258, %v261
        %vm263 = vweird.f32 %v226
        %vm264 = vweird.f32 %v258
        %vm265 = vmor %vm263, %vm264
        %v266 = vsel %vm265, %v258, %v262
        %v267 = vand.u32 2147483647, %v226
        %vm268 = vcmp.eq.f32.partialorder %v267, 8.507059e+37
        %v269 = vand.u32 %v226, 2147483648
        %v270 = vor.u32 1.1754944e-38, %v269
        %v271 = vsel %vm268, %v270, %v266
        %v272 = vmul.f32 %v154, %v271
        %v273 = vrcp.pop %v227
        %v274 = vmul.f32 %v227, %v273
        %v275 = vsub.f32 1.0, %v274
        %v276 = vmul.f32 %v273, %v275
        %v277 = vadd.f32 %v273, %v276
        %vm278 = vweird.f32 %v227
        %vm279 = vweird.f32 %v273
        %vm280 = vmor %vm278, %vm279
        %v281 = vsel %vm280, %v273, %v277
        %v282 = vand.u32 2147483647, %v227
        %vm283 = vcmp.eq.f32.partialorder %v282, 8.507059e+37
        %v284 = vand.u32 %v227, 2147483648
        %v285 = vor.u32 1.1754944e-38, %v284
        %v286 = vsel %vm283, %v285, %v281
        %v287 = vmul.f32 %v155, %v286
        %v288 = vlaneseq
        %v289 = vshrl.u32 %v288, 7
        %v290 = vadd.s32 %v289, 8
        %v291 = vlaneseq
        %v292 = vand.u32 %v291, 127
        %vm293 = vcmp.ge.s32.totalorder %v292, 9
        %v294 = vsel %vm293, 1, 0
        %vm295 = vcmp.ge.s32.totalorder %v292, 18
        %v296 = vsel %vm295, 1, 0
        %v297 = vadd.s32 %v294, %v296
        %vm298 = vcmp.ge.s32.totalorder %v292, 27
        %v299 = vsel %vm298, 1, 0
        %v300 = vadd.s32 %v297, %v299
        %v301 = vmul.u32 %v300, 9
        %v302 = vsub.s32 %v292, %v301
        %vm303 = vcmp.ge.s32.totalorder %v302, 3
        %v304 = vsel %vm303, 1, 0
        %vm305 = vcmp.ge.s32.totalorder %v302, 6
        %v306 = vsel %vm305, 1, 0
        %v307 = vadd.s32 %v304, %v306
        %v308 = vmul.u32 %v307, 3
        %v309 = vsub.s32 %v302, %v308
        %v310 = vsub.s32 4, %v300
        %v311 = vand.u32 %v310, 3
        %vm312 = vcmp.eq.s32.totalorder %v311, 0
        %vm313 = vcmp.eq.s32.totalorder %v311, 1
        %vm314 = vcmp.eq.s32.totalorder %v311, 2
        %v315 = vsub.s32 2, %v307
        %v316 = vsub.s32 2, %v309
        %v317 = vsel %vm314, %v315, %v316
        %v318 = vsel %vm313, %v309, %v317
        %v319 = vsel %vm312, %v307, %v318
        %v320 = vsel %vm314, %v316, %v307
        %v321 = vsel %vm313, %v315, %v320
        %v322 = vsel %vm312, %v309, %v321
        %v323 = vmul.u32 %v319, 3
        %v324 = vadd.s32 %v323, %v322
        %vm325 = vcmp.eq.s32.totalorder %v289, %v324
        %vm326 = vcmp.eq.s32.totalorder %v290, %v324
        %v327 = vsel %vm325, 0.25, 0.0
        %v328 = vsel %vm326, 0.25, 0.0
        %v329 = vsub.s32 5, %v300
        %v330 = vand.u32 %v329, 3
        %vm331 = vcmp.eq.s32.totalorder %v330, 0
        %vm332 = vcmp.eq.s32.totalorder %v330, 1
        %vm333 = vcmp.eq.s32.totalorder %v330, 2
        %v334 = vsel %vm333, %v315, %v316
        %v335 = vsel %vm332, %v309, %v334
        %v336 = vsel %vm331, %v307, %v335
        %v337 = vsel %vm333, %v316, %v307
        %v338 = vsel %vm332, %v315, %v337
        %v339 = vsel %vm331, %v309, %v338
        %v340 = vmul.u32 %v336, 3
        %v341 = vadd.s32 %v340, %v339
        %vm342 = vcmp.eq.s32.totalorder %v289, %v341
        %vm343 = vcmp.eq.s32.totalorder %v290, %v341
        %v344 = vsel %vm342, 0.25, 0.0
        %v345 = vsel %vm343, 0.25, 0.0
        %v347 = vsel %vm128, %v257, 0
        %vm349 = vcmask 1040384
        %v351 = vsel %vm349, %v345, 0
        %353 = vmatpush.msra.mxu0 0.0
        %354 = vmatpush.msra.mxu0 0.0
        %355 = vmatpush.msra.mxu0 0.0
        %356 = vmatpush.msra.mxu0 0.0
        %357 = vmatpush.msra.mxu0 0.0
        %358 = vmatpush.msra.mxu0 0.0
        %359 = vmatpush.msra.mxu0 0.0
        %360 = vmatpush.msra.mxu0 0.0
        %361 = vmatpush.msra.mxu0 0.0
        %362 = vmatpush.msra.mxu0 0.0
        %363 = vmatpush.msra.mxu0 0.0
        %364 = vmatpush.msra.mxu0 0.0
        %365 = vmatpush.msra.mxu0 0.0
        %366 = vmatpush.msra.mxu0 0.0
        %v367 = vand.u32 %v351, 4294901760
        %368 = vmatpush.msra.mxu0 %v367
        %369 = vmatpush.msra.mxu0 %v344
        %v370 = vand.u32 %v347, 4294901760
        %v371 = vsub.f32 %v347, %v370
        %v372 = vand.u32 %v371, 4294901760
        %v373 = vsub.f32 %v371, %v372
        %v374 = vand.u32 %v373, 4294901760
        %375 = vmatmul.f32.gmra.mxu0 %v374
        %v376 = vpop.f32.mrf.mxu0
        %v377 = vadd.f32 0.0, %v376
        %378 = vdwg.mxu0
        %379 = vmatpush.msra.mxu0 0.0
        %380 = vmatpush.msra.mxu0 0.0
        %381 = vmatpush.msra.mxu0 0.0
        %382 = vmatpush.msra.mxu0 0.0
        %383 = vmatpush.msra.mxu0 0.0
        %384 = vmatpush.msra.mxu0 0.0
        %385 = vmatpush.msra.mxu0 0.0
        %386 = vmatpush.msra.mxu0 0.0
        %387 = vmatpush.msra.mxu0 0.0
        %388 = vmatpush.msra.mxu0 0.0
        %389 = vmatpush.msra.mxu0 0.0
        %390 = vmatpush.msra.mxu0 0.0
        %391 = vmatpush.msra.mxu0 0.0
        %392 = vmatpush.msra.mxu0 0.0
        %v393 = vand.u32 %v351, 4294901760
        %v394 = vsub.f32 %v351, %v393
        %v395 = vand.u32 %v394, 4294901760
        %v396 = vsub.f32 %v394, %v395
        %v397 = vand.u32 %v396, 4294901760
        %398 = vmatpush.msra.mxu0 %v397
        %v399 = vsub.f32 %v344, %v344
        %v400 = vand.u32 %v399, 4294901760
        %v401 = vsub.f32 %v399, %v400
        %v402 = vand.u32 %v401, 4294901760
        %403 = vmatpush.msra.mxu0 %v402
        %v404 = vand.u32 %v347, 4294901760
        %405 = vmatmul.f32.gmra.mxu0 %v404
        %v406 = vpop.f32.mrf.mxu0
        %v407 = vadd.f32 %v377, %v406
        %408 = vdwg.mxu0
        %409 = vmatpush.msra.mxu0 0.0
        %410 = vmatpush.msra.mxu0 0.0
        %411 = vmatpush.msra.mxu0 0.0
        %412 = vmatpush.msra.mxu0 0.0
        %413 = vmatpush.msra.mxu0 0.0
        %414 = vmatpush.msra.mxu0 0.0
        %415 = vmatpush.msra.mxu0 0.0
        %416 = vmatpush.msra.mxu0 0.0
        %417 = vmatpush.msra.mxu0 0.0
        %418 = vmatpush.msra.mxu0 0.0
        %419 = vmatpush.msra.mxu0 0.0
        %420 = vmatpush.msra.mxu0 0.0
        %421 = vmatpush.msra.mxu0 0.0
        %422 = vmatpush.msra.mxu0 0.0
        %v423 = vand.u32 %v351, 4294901760
        %v424 = vsub.f32 %v351, %v423
        %425 = vmatpush.msra.mxu0 %v424
        %v426 = vsub.f32 %v344, %v344
        %427 = vmatpush.msra.mxu0 %v426
        %v428 = vand.u32 %v347, 4294901760
        %v429 = vsub.f32 %v347, %v428
        %430 = vmatmul.f32.gmra.mxu0 %v429
        %v431 = vpop.f32.mrf.mxu0
        %v432 = vadd.f32 %v407, %v431
        %433 = vdwg.mxu0
        %434 = vmatpush.msra.mxu0 0.0
        %435 = vmatpush.msra.mxu0 0.0
        %436 = vmatpush.msra.mxu0 0.0
        %437 = vmatpush.msra.mxu0 0.0
        %438 = vmatpush.msra.mxu0 0.0
        %439 = vmatpush.msra.mxu0 0.0
        %440 = vmatpush.msra.mxu0 0.0
        %441 = vmatpush.msra.mxu0 0.0
        %442 = vmatpush.msra.mxu0 0.0
        %443 = vmatpush.msra.mxu0 0.0
        %444 = vmatpush.msra.mxu0 0.0
        %445 = vmatpush.msra.mxu0 0.0
        %446 = vmatpush.msra.mxu0 0.0
        %447 = vmatpush.msra.mxu0 0.0
        %v448 = vand.u32 %v351, 4294901760
        %449 = vmatpush.msra.mxu0 %v448
        %450 = vmatpush.msra.mxu0 %v344
        %v451 = vand.u32 %v347, 4294901760
        %v452 = vsub.f32 %v347, %v451
        %v453 = vand.u32 %v452, 4294901760
        %454 = vmatmul.f32.gmra.mxu0 %v453
        %v455 = vpop.f32.mrf.mxu0
        %v456 = vadd.f32 %v432, %v455
        %457 = vdwg.mxu0
        %458 = vmatpush.msra.mxu0 0.0
        %459 = vmatpush.msra.mxu0 0.0
        %460 = vmatpush.msra.mxu0 0.0
        %461 = vmatpush.msra.mxu0 0.0
        %462 = vmatpush.msra.mxu0 0.0
        %463 = vmatpush.msra.mxu0 0.0
        %464 = vmatpush.msra.mxu0 0.0
        %465 = vmatpush.msra.mxu0 0.0
        %466 = vmatpush.msra.mxu0 0.0
        %467 = vmatpush.msra.mxu0 0.0
        %468 = vmatpush.msra.mxu0 0.0
        %469 = vmatpush.msra.mxu0 0.0
        %470 = vmatpush.msra.mxu0 0.0
        %471 = vmatpush.msra.mxu0 0.0
        %v472 = vand.u32 %v351, 4294901760
        %v473 = vsub.f32 %v351, %v472
        %v474 = vand.u32 %v473, 4294901760
        %475 = vmatpush.msra.mxu0 %v474
        %v476 = vsub.f32 %v344, %v344
        %v477 = vand.u32 %v476, 4294901760
        %478 = vmatpush.msra.mxu0 %v477
        %v479 = vand.u32 %v347, 4294901760
        %480 = vmatmul.f32.gmra.mxu0 %v479
        %v481 = vpop.f32.mrf.mxu0
        %v482 = vadd.f32 %v456, %v481
        %483 = vdwg.mxu0
        %484 = vmatpush.msra.mxu0 0.0
        %485 = vmatpush.msra.mxu0 0.0
        %486 = vmatpush.msra.mxu0 0.0
        %487 = vmatpush.msra.mxu0 0.0
        %488 = vmatpush.msra.mxu0 0.0
        %489 = vmatpush.msra.mxu0 0.0
        %490 = vmatpush.msra.mxu0 0.0
        %491 = vmatpush.msra.mxu0 0.0
        %492 = vmatpush.msra.mxu0 0.0
        %493 = vmatpush.msra.mxu0 0.0
        %494 = vmatpush.msra.mxu0 0.0
        %495 = vmatpush.msra.mxu0 0.0
        %496 = vmatpush.msra.mxu0 0.0
        %497 = vmatpush.msra.mxu0 0.0
        %v498 = vand.u32 %v351, 4294901760
        %499 = vmatpush.msra.mxu0 %v498
        %500 = vmatpush.msra.mxu0 %v344
        %v501 = vand.u32 %v347, 4294901760
        %502 = vmatmul.f32.gmra.mxu0 %v501
        %v503 = vpop.f32.mrf.mxu0
        %v504 = vadd.f32 %v482, %v503
        %505 = vdwg.mxu0
        %v507 = vsel %vm128, %v242, 0
        %v510 = vsel %vm349, %v328, 0
        %512 = vmatpush.msra.mxu0 0.0
        %513 = vmatpush.msra.mxu0 0.0
        %514 = vmatpush.msra.mxu0 0.0
        %515 = vmatpush.msra.mxu0 0.0
        %516 = vmatpush.msra.mxu0 0.0
        %517 = vmatpush.msra.mxu0 0.0
        %518 = vmatpush.msra.mxu0 0.0
        %519 = vmatpush.msra.mxu0 0.0
        %520 = vmatpush.msra.mxu0 0.0
        %521 = vmatpush.msra.mxu0 0.0
        %522 = vmatpush.msra.mxu0 0.0
        %523 = vmatpush.msra.mxu0 0.0
        %524 = vmatpush.msra.mxu0 0.0
        %525 = vmatpush.msra.mxu0 0.0
        %v526 = vand.u32 %v510, 4294901760
        %527 = vmatpush.msra.mxu0 %v526
        %528 = vmatpush.msra.mxu0 %v327
        %v529 = vand.u32 %v507, 4294901760
        %v530 = vsub.f32 %v507, %v529
        %v531 = vand.u32 %v530, 4294901760
        %v532 = vsub.f32 %v530, %v531
        %v533 = vand.u32 %v532, 4294901760
        %534 = vmatmul.f32.gmra.mxu0 %v533
        %v535 = vpop.f32.mrf.mxu0
        %v536 = vadd.f32 %v504, %v535
        %537 = vdwg.mxu0
        %538 = vmatpush.msra.mxu0 0.0
        %539 = vmatpush.msra.mxu0 0.0
        %540 = vmatpush.msra.mxu0 0.0
        %541 = vmatpush.msra.mxu0 0.0
        %542 = vmatpush.msra.mxu0 0.0
        %543 = vmatpush.msra.mxu0 0.0
        %544 = vmatpush.msra.mxu0 0.0
        %545 = vmatpush.msra.mxu0 0.0
        %546 = vmatpush.msra.mxu0 0.0
        %547 = vmatpush.msra.mxu0 0.0
        %548 = vmatpush.msra.mxu0 0.0
        %549 = vmatpush.msra.mxu0 0.0
        %550 = vmatpush.msra.mxu0 0.0
        %551 = vmatpush.msra.mxu0 0.0
        %v552 = vand.u32 %v510, 4294901760
        %v553 = vsub.f32 %v510, %v552
        %v554 = vand.u32 %v553, 4294901760
        %v555 = vsub.f32 %v553, %v554
        %v556 = vand.u32 %v555, 4294901760
        %557 = vmatpush.msra.mxu0 %v556
        %v558 = vsub.f32 %v327, %v327
        %v559 = vand.u32 %v558, 4294901760
        %v560 = vsub.f32 %v558, %v559
        %v561 = vand.u32 %v560, 4294901760
        %562 = vmatpush.msra.mxu0 %v561
        %v563 = vand.u32 %v507, 4294901760
        %564 = vmatmul.f32.gmra.mxu0 %v563
        %v565 = vpop.f32.mrf.mxu0
        %v566 = vadd.f32 %v536, %v565
        %567 = vdwg.mxu0
        %568 = vmatpush.msra.mxu0 0.0
        %569 = vmatpush.msra.mxu0 0.0
        %570 = vmatpush.msra.mxu0 0.0
        %571 = vmatpush.msra.mxu0 0.0
        %572 = vmatpush.msra.mxu0 0.0
        %573 = vmatpush.msra.mxu0 0.0
        %574 = vmatpush.msra.mxu0 0.0
        %575 = vmatpush.msra.mxu0 0.0
        %576 = vmatpush.msra.mxu0 0.0
        %577 = vmatpush.msra.mxu0 0.0
        %578 = vmatpush.msra.mxu0 0.0
        %579 = vmatpush.msra.mxu0 0.0
        %580 = vmatpush.msra.mxu0 0.0
        %581 = vmatpush.msra.mxu0 0.0
        %v582 = vand.u32 %v510, 4294901760
        %v583 = vsub.f32 %v510, %v582
        %584 = vmatpush.msra.mxu0 %v583
        %v585 = vsub.f32 %v327, %v327
        %586 = vmatpush.msra.mxu0 %v585
        %v587 = vand.u32 %v507, 4294901760
        %v588 = vsub.f32 %v507, %v587
        %589 = vmatmul.f32.gmra.mxu0 %v588
        %v590 = vpop.f32.mrf.mxu0
        %v591 = vadd.f32 %v566, %v590
        %592 = vdwg.mxu0
        %593 = vmatpush.msra.mxu0 0.0
        %594 = vmatpush.msra.mxu0 0.0
        %595 = vmatpush.msra.mxu0 0.0
        %596 = vmatpush.msra.mxu0 0.0
        %597 = vmatpush.msra.mxu0 0.0
        %598 = vmatpush.msra.mxu0 0.0
        %599 = vmatpush.msra.mxu0 0.0
        %600 = vmatpush.msra.mxu0 0.0
        %601 = vmatpush.msra.mxu0 0.0
        %602 = vmatpush.msra.mxu0 0.0
        %603 = vmatpush.msra.mxu0 0.0
        %604 = vmatpush.msra.mxu0 0.0
        %605 = vmatpush.msra.mxu0 0.0
        %606 = vmatpush.msra.mxu0 0.0
        %v607 = vand.u32 %v510, 4294901760
        %608 = vmatpush.msra.mxu0 %v607
        %609 = vmatpush.msra.mxu0 %v327
        %v610 = vand.u32 %v507, 4294901760
        %v611 = vsub.f32 %v507, %v610
        %v612 = vand.u32 %v611, 4294901760
        %613 = vmatmul.f32.gmra.mxu0 %v612
        %v614 = vpop.f32.mrf.mxu0
        %v615 = vadd.f32 %v591, %v614
        %616 = vdwg.mxu0
        %617 = vmatpush.msra.mxu0 0.0
        %618 = vmatpush.msra.mxu0 0.0
        %619 = vmatpush.msra.mxu0 0.0
        %620 = vmatpush.msra.mxu0 0.0
        %621 = vmatpush.msra.mxu0 0.0
        %622 = vmatpush.msra.mxu0 0.0
        %623 = vmatpush.msra.mxu0 0.0
        %624 = vmatpush.msra.mxu0 0.0
        %625 = vmatpush.msra.mxu0 0.0
        %626 = vmatpush.msra.mxu0 0.0
        %627 = vmatpush.msra.mxu0 0.0
        %628 = vmatpush.msra.mxu0 0.0
        %629 = vmatpush.msra.mxu0 0.0
        %630 = vmatpush.msra.mxu0 0.0
        %v631 = vand.u32 %v510, 4294901760
        %v632 = vsub.f32 %v510, %v631
        %v633 = vand.u32 %v632, 4294901760
        %634 = vmatpush.msra.mxu0 %v633
        %v635 = vsub.f32 %v327, %v327
        %v636 = vand.u32 %v635, 4294901760
        %637 = vmatpush.msra.mxu0 %v636
        %v638 = vand.u32 %v507, 4294901760
        %639 = vmatmul.f32.gmra.mxu0 %v638
        %v640 = vpop.f32.mrf.mxu0
        %v641 = vadd.f32 %v615, %v640
        %642 = vdwg.mxu0
        %643 = vmatpush.msra.mxu0 0.0
        %644 = vmatpush.msra.mxu0 0.0
        %645 = vmatpush.msra.mxu0 0.0
        %646 = vmatpush.msra.mxu0 0.0
        %647 = vmatpush.msra.mxu0 0.0
        %648 = vmatpush.msra.mxu0 0.0
        %649 = vmatpush.msra.mxu0 0.0
        %650 = vmatpush.msra.mxu0 0.0
        %651 = vmatpush.msra.mxu0 0.0
        %652 = vmatpush.msra.mxu0 0.0
        %653 = vmatpush.msra.mxu0 0.0
        %654 = vmatpush.msra.mxu0 0.0
        %655 = vmatpush.msra.mxu0 0.0
        %656 = vmatpush.msra.mxu0 0.0
        %v657 = vand.u32 %v510, 4294901760
        %658 = vmatpush.msra.mxu0 %v657
        %659 = vmatpush.msra.mxu0 %v327
        %v660 = vand.u32 %v507, 4294901760
        %661 = vmatmul.f32.gmra.mxu0 %v660
        %v662 = vpop.f32.mrf.mxu0
        %v663 = vadd.f32 %v641, %v662
        %664 = vdwg.mxu0
        %v665 = vsub.s32 6, %v300
        %v666 = vand.u32 %v665, 3
        %vm667 = vcmp.eq.s32.totalorder %v666, 0
        %vm668 = vcmp.eq.s32.totalorder %v666, 1
        %vm669 = vcmp.eq.s32.totalorder %v666, 2
        %v670 = vsel %vm669, %v315, %v316
        %v671 = vsel %vm668, %v309, %v670
        %v672 = vsel %vm667, %v307, %v671
        %v673 = vsel %vm669, %v316, %v307
        %v674 = vsel %vm668, %v315, %v673
        %v675 = vsel %vm667, %v309, %v674
        %v676 = vmul.u32 %v672, 3
        %v677 = vadd.s32 %v676, %v675
        %vm678 = vcmp.eq.s32.totalorder %v289, %v677
        %vm679 = vcmp.eq.s32.totalorder %v290, %v677
        %v680 = vsel %vm678, 0.25, 0.0
        %v681 = vsel %vm679, 0.25, 0.0
        %v683 = vsel %vm128, %v272, 0
        %v686 = vsel %vm349, %v681, 0
        %688 = vmatpush.msra.mxu0 0.0
        %689 = vmatpush.msra.mxu0 0.0
        %690 = vmatpush.msra.mxu0 0.0
        %691 = vmatpush.msra.mxu0 0.0
        %692 = vmatpush.msra.mxu0 0.0
        %693 = vmatpush.msra.mxu0 0.0
        %694 = vmatpush.msra.mxu0 0.0
        %695 = vmatpush.msra.mxu0 0.0
        %696 = vmatpush.msra.mxu0 0.0
        %697 = vmatpush.msra.mxu0 0.0
        %698 = vmatpush.msra.mxu0 0.0
        %699 = vmatpush.msra.mxu0 0.0
        %700 = vmatpush.msra.mxu0 0.0
        %701 = vmatpush.msra.mxu0 0.0
        %v702 = vand.u32 %v686, 4294901760
        %703 = vmatpush.msra.mxu0 %v702
        %704 = vmatpush.msra.mxu0 %v680
        %v705 = vand.u32 %v683, 4294901760
        %v706 = vsub.f32 %v683, %v705
        %v707 = vand.u32 %v706, 4294901760
        %v708 = vsub.f32 %v706, %v707
        %v709 = vand.u32 %v708, 4294901760
        %710 = vmatmul.f32.gmra.mxu0 %v709
        %v711 = vpop.f32.mrf.mxu0
        %v712 = vadd.f32 0.0, %v711
        %713 = vdwg.mxu0
        %714 = vmatpush.msra.mxu0 0.0
        %715 = vmatpush.msra.mxu0 0.0
        %716 = vmatpush.msra.mxu0 0.0
        %717 = vmatpush.msra.mxu0 0.0
        %718 = vmatpush.msra.mxu0 0.0
        %719 = vmatpush.msra.mxu0 0.0
        %720 = vmatpush.msra.mxu0 0.0
        %721 = vmatpush.msra.mxu0 0.0
        %722 = vmatpush.msra.mxu0 0.0
        %723 = vmatpush.msra.mxu0 0.0
        %724 = vmatpush.msra.mxu0 0.0
        %725 = vmatpush.msra.mxu0 0.0
        %726 = vmatpush.msra.mxu0 0.0
        %727 = vmatpush.msra.mxu0 0.0
        %v728 = vand.u32 %v686, 4294901760
        %v729 = vsub.f32 %v686, %v728
        %v730 = vand.u32 %v729, 4294901760
        %v731 = vsub.f32 %v729, %v730
        %v732 = vand.u32 %v731, 4294901760
        %733 = vmatpush.msra.mxu0 %v732
        %v734 = vsub.f32 %v680, %v680
        %v735 = vand.u32 %v734, 4294901760
        %v736 = vsub.f32 %v734, %v735
        %v737 = vand.u32 %v736, 4294901760
        %738 = vmatpush.msra.mxu0 %v737
        %v739 = vand.u32 %v683, 4294901760
        %740 = vmatmul.f32.gmra.mxu0 %v739
        %v741 = vpop.f32.mrf.mxu0
        %v742 = vadd.f32 %v712, %v741
        %743 = vdwg.mxu0
        %744 = vmatpush.msra.mxu0 0.0
        %745 = vmatpush.msra.mxu0 0.0
        %746 = vmatpush.msra.mxu0 0.0
        %747 = vmatpush.msra.mxu0 0.0
        %748 = vmatpush.msra.mxu0 0.0
        %749 = vmatpush.msra.mxu0 0.0
        %750 = vmatpush.msra.mxu0 0.0
        %751 = vmatpush.msra.mxu0 0.0
        %752 = vmatpush.msra.mxu0 0.0
        %753 = vmatpush.msra.mxu0 0.0
        %754 = vmatpush.msra.mxu0 0.0
        %755 = vmatpush.msra.mxu0 0.0
        %756 = vmatpush.msra.mxu0 0.0
        %757 = vmatpush.msra.mxu0 0.0
        %v758 = vand.u32 %v686, 4294901760
        %v759 = vsub.f32 %v686, %v758
        %760 = vmatpush.msra.mxu0 %v759
        %v761 = vsub.f32 %v680, %v680
        %762 = vmatpush.msra.mxu0 %v761
        %v763 = vand.u32 %v683, 4294901760
        %v764 = vsub.f32 %v683, %v763
        %765 = vmatmul.f32.gmra.mxu0 %v764
        %v766 = vpop.f32.mrf.mxu0
        %v767 = vadd.f32 %v742, %v766
        %768 = vdwg.mxu0
        %769 = vmatpush.msra.mxu0 0.0
        %770 = vmatpush.msra.mxu0 0.0
        %771 = vmatpush.msra.mxu0 0.0
        %772 = vmatpush.msra.mxu0 0.0
        %773 = vmatpush.msra.mxu0 0.0
        %774 = vmatpush.msra.mxu0 0.0
        %775 = vmatpush.msra.mxu0 0.0
        %776 = vmatpush.msra.mxu0 0.0
        %777 = vmatpush.msra.mxu0 0.0
        %778 = vmatpush.msra.mxu0 0.0
        %779 = vmatpush.msra.mxu0 0.0
        %780 = vmatpush.msra.mxu0 0.0
        %781 = vmatpush.msra.mxu0 0.0
        %782 = vmatpush.msra.mxu0 0.0
        %v783 = vand.u32 %v686, 4294901760
        %784 = vmatpush.msra.mxu0 %v783
        %785 = vmatpush.msra.mxu0 %v680
        %v786 = vand.u32 %v683, 4294901760
        %v787 = vsub.f32 %v683, %v786
        %v788 = vand.u32 %v787, 4294901760
        %789 = vmatmul.f32.gmra.mxu0 %v788
        %v790 = vpop.f32.mrf.mxu0
        %v791 = vadd.f32 %v767, %v790
        %792 = vdwg.mxu0
        %793 = vmatpush.msra.mxu0 0.0
        %794 = vmatpush.msra.mxu0 0.0
        %795 = vmatpush.msra.mxu0 0.0
        %796 = vmatpush.msra.mxu0 0.0
        %797 = vmatpush.msra.mxu0 0.0
        %798 = vmatpush.msra.mxu0 0.0
        %799 = vmatpush.msra.mxu0 0.0
        %800 = vmatpush.msra.mxu0 0.0
        %801 = vmatpush.msra.mxu0 0.0
        %802 = vmatpush.msra.mxu0 0.0
        %803 = vmatpush.msra.mxu0 0.0
        %804 = vmatpush.msra.mxu0 0.0
        %805 = vmatpush.msra.mxu0 0.0
        %806 = vmatpush.msra.mxu0 0.0
        %v807 = vand.u32 %v686, 4294901760
        %v808 = vsub.f32 %v686, %v807
        %v809 = vand.u32 %v808, 4294901760
        %810 = vmatpush.msra.mxu0 %v809
        %v811 = vsub.f32 %v680, %v680
        %v812 = vand.u32 %v811, 4294901760
        %813 = vmatpush.msra.mxu0 %v812
        %v814 = vand.u32 %v683, 4294901760
        %815 = vmatmul.f32.gmra.mxu0 %v814
        %v816 = vpop.f32.mrf.mxu0
        %v817 = vadd.f32 %v791, %v816
        %818 = vdwg.mxu0
        %819 = vmatpush.msra.mxu0 0.0
        %820 = vmatpush.msra.mxu0 0.0
        %821 = vmatpush.msra.mxu0 0.0
        %822 = vmatpush.msra.mxu0 0.0
        %823 = vmatpush.msra.mxu0 0.0
        %824 = vmatpush.msra.mxu0 0.0
        %825 = vmatpush.msra.mxu0 0.0
        %826 = vmatpush.msra.mxu0 0.0
        %827 = vmatpush.msra.mxu0 0.0
        %828 = vmatpush.msra.mxu0 0.0
        %829 = vmatpush.msra.mxu0 0.0
        %830 = vmatpush.msra.mxu0 0.0
        %831 = vmatpush.msra.mxu0 0.0
        %832 = vmatpush.msra.mxu0 0.0
        %v833 = vand.u32 %v686, 4294901760
        %834 = vmatpush.msra.mxu0 %v833
        %835 = vmatpush.msra.mxu0 %v680
        %v836 = vand.u32 %v683, 4294901760
        %837 = vmatmul.f32.gmra.mxu0 %v836
        %v838 = vpop.f32.mrf.mxu0
        %v839 = vadd.f32 %v817, %v838
        %840 = vdwg.mxu0
        %v841 = vadd.f32 %v663, %v839
        %v842 = vsub.s32 7, %v300
        %v843 = vand.u32 %v842, 3
        %vm844 = vcmp.eq.s32.totalorder %v843, 0
        %vm845 = vcmp.eq.s32.totalorder %v843, 1
        %vm846 = vcmp.eq.s32.totalorder %v843, 2
        %v847 = vsel %vm846, %v315, %v316
        %v848 = vsel %vm845, %v309, %v847
        %v849 = vsel %vm844, %v307, %v848
        %v850 = vsel %vm846, %v316, %v307
        %v851 = vsel %vm845, %v315, %v850
        %v852 = vsel %vm844, %v309, %v851
        %v853 = vmul.u32 %v849, 3
        %v854 = vadd.s32 %v853, %v852
        %vm855 = vcmp.eq.s32.totalorder %v289, %v854
        %vm856 = vcmp.eq.s32.totalorder %v290, %v854
        %v857 = vsel %vm855, 0.25, 0.0
        %v858 = vsel %vm856, 0.25, 0.0
        %v860 = vsel %vm128, %v287, 0
        %v863 = vsel %vm349, %v858, 0
        %865 = vmatpush.msra.mxu0 0.0
        %866 = vmatpush.msra.mxu0 0.0
        %867 = vmatpush.msra.mxu0 0.0
        %868 = vmatpush.msra.mxu0 0.0
        %869 = vmatpush.msra.mxu0 0.0
        %870 = vmatpush.msra.mxu0 0.0
        %871 = vmatpush.msra.mxu0 0.0
        %872 = vmatpush.msra.mxu0 0.0
        %873 = vmatpush.msra.mxu0 0.0
        %874 = vmatpush.msra.mxu0 0.0
        %875 = vmatpush.msra.mxu0 0.0
        %876 = vmatpush.msra.mxu0 0.0
        %877 = vmatpush.msra.mxu0 0.0
        %878 = vmatpush.msra.mxu0 0.0
        %v879 = vand.u32 %v863, 4294901760
        %880 = vmatpush.msra.mxu0 %v879
        %881 = vmatpush.msra.mxu0 %v857
        %v882 = vand.u32 %v860, 4294901760
        %v883 = vsub.f32 %v860, %v882
        %v884 = vand.u32 %v883, 4294901760
        %v885 = vsub.f32 %v883, %v884
        %v886 = vand.u32 %v885, 4294901760
        %887 = vmatmul.f32.gmra.mxu0 %v886
        %v888 = vpop.f32.mrf.mxu0
        %v889 = vadd.f32 0.0, %v888
        %890 = vdwg.mxu0
        %891 = vmatpush.msra.mxu0 0.0
        %892 = vmatpush.msra.mxu0 0.0
        %893 = vmatpush.msra.mxu0 0.0
        %894 = vmatpush.msra.mxu0 0.0
        %895 = vmatpush.msra.mxu0 0.0
        %896 = vmatpush.msra.mxu0 0.0
        %897 = vmatpush.msra.mxu0 0.0
        %898 = vmatpush.msra.mxu0 0.0
        %899 = vmatpush.msra.mxu0 0.0
        %900 = vmatpush.msra.mxu0 0.0
        %901 = vmatpush.msra.mxu0 0.0
        %902 = vmatpush.msra.mxu0 0.0
        %903 = vmatpush.msra.mxu0 0.0
        %904 = vmatpush.msra.mxu0 0.0
        %v905 = vand.u32 %v863, 4294901760
        %v906 = vsub.f32 %v863, %v905
        %v907 = vand.u32 %v906, 4294901760
        %v908 = vsub.f32 %v906, %v907
        %v909 = vand.u32 %v908, 4294901760
        %910 = vmatpush.msra.mxu0 %v909
        %v911 = vsub.f32 %v857, %v857
        %v912 = vand.u32 %v911, 4294901760
        %v913 = vsub.f32 %v911, %v912
        %v914 = vand.u32 %v913, 4294901760
        %915 = vmatpush.msra.mxu0 %v914
        %v916 = vand.u32 %v860, 4294901760
        %917 = vmatmul.f32.gmra.mxu0 %v916
        %v918 = vpop.f32.mrf.mxu0
        %v919 = vadd.f32 %v889, %v918
        %920 = vdwg.mxu0
        %921 = vmatpush.msra.mxu0 0.0
        %922 = vmatpush.msra.mxu0 0.0
        %923 = vmatpush.msra.mxu0 0.0
        %924 = vmatpush.msra.mxu0 0.0
        %925 = vmatpush.msra.mxu0 0.0
        %926 = vmatpush.msra.mxu0 0.0
        %927 = vmatpush.msra.mxu0 0.0
        %928 = vmatpush.msra.mxu0 0.0
        %929 = vmatpush.msra.mxu0 0.0
        %930 = vmatpush.msra.mxu0 0.0
        %931 = vmatpush.msra.mxu0 0.0
        %932 = vmatpush.msra.mxu0 0.0
        %933 = vmatpush.msra.mxu0 0.0
        %934 = vmatpush.msra.mxu0 0.0
        %v935 = vand.u32 %v863, 4294901760
        %v936 = vsub.f32 %v863, %v935
        %937 = vmatpush.msra.mxu0 %v936
        %v938 = vsub.f32 %v857, %v857
        %939 = vmatpush.msra.mxu0 %v938
        %v940 = vand.u32 %v860, 4294901760
        %v941 = vsub.f32 %v860, %v940
        %942 = vmatmul.f32.gmra.mxu0 %v941
        %v943 = vpop.f32.mrf.mxu0
        %v944 = vadd.f32 %v919, %v943
        %945 = vdwg.mxu0
        %946 = vmatpush.msra.mxu0 0.0
        %947 = vmatpush.msra.mxu0 0.0
        %948 = vmatpush.msra.mxu0 0.0
        %949 = vmatpush.msra.mxu0 0.0
        %950 = vmatpush.msra.mxu0 0.0
        %951 = vmatpush.msra.mxu0 0.0
        %952 = vmatpush.msra.mxu0 0.0
        %953 = vmatpush.msra.mxu0 0.0
        %954 = vmatpush.msra.mxu0 0.0
        %955 = vmatpush.msra.mxu0 0.0
        %956 = vmatpush.msra.mxu0 0.0
        %957 = vmatpush.msra.mxu0 0.0
        %958 = vmatpush.msra.mxu0 0.0
        %959 = vmatpush.msra.mxu0 0.0
        %v960 = vand.u32 %v863, 4294901760
        %961 = vmatpush.msra.mxu0 %v960
        %962 = vmatpush.msra.mxu0 %v857
        %v963 = vand.u32 %v860, 4294901760
        %v964 = vsub.f32 %v860, %v963
        %v965 = vand.u32 %v964, 4294901760
        %966 = vmatmul.f32.gmra.mxu0 %v965
        %v967 = vpop.f32.mrf.mxu0
        %v968 = vadd.f32 %v944, %v967
        %969 = vdwg.mxu0
        %970 = vmatpush.msra.mxu0 0.0
        %971 = vmatpush.msra.mxu0 0.0
        %972 = vmatpush.msra.mxu0 0.0
        %973 = vmatpush.msra.mxu0 0.0
        %974 = vmatpush.msra.mxu0 0.0
        %975 = vmatpush.msra.mxu0 0.0
        %976 = vmatpush.msra.mxu0 0.0
        %977 = vmatpush.msra.mxu0 0.0
        %978 = vmatpush.msra.mxu0 0.0
        %979 = vmatpush.msra.mxu0 0.0
        %980 = vmatpush.msra.mxu0 0.0
        %981 = vmatpush.msra.mxu0 0.0
        %982 = vmatpush.msra.mxu0 0.0
        %983 = vmatpush.msra.mxu0 0.0
        %v984 = vand.u32 %v863, 4294901760
        %v985 = vsub.f32 %v863, %v984
        %v986 = vand.u32 %v985, 4294901760
        %987 = vmatpush.msra.mxu0 %v986
        %v988 = vsub.f32 %v857, %v857
        %v989 = vand.u32 %v988, 4294901760
        %990 = vmatpush.msra.mxu0 %v989
        %v991 = vand.u32 %v860, 4294901760
        %992 = vmatmul.f32.gmra.mxu0 %v991
        %v993 = vpop.f32.mrf.mxu0
        %v994 = vadd.f32 %v968, %v993
        %995 = vdwg.mxu0
        %996 = vmatpush.msra.mxu0 0.0
        %997 = vmatpush.msra.mxu0 0.0
        %998 = vmatpush.msra.mxu0 0.0
        %999 = vmatpush.msra.mxu0 0.0
        %1000 = vmatpush.msra.mxu0 0.0
        %1001 = vmatpush.msra.mxu0 0.0
        %1002 = vmatpush.msra.mxu0 0.0
        %1003 = vmatpush.msra.mxu0 0.0
        %1004 = vmatpush.msra.mxu0 0.0
        %1005 = vmatpush.msra.mxu0 0.0
        %1006 = vmatpush.msra.mxu0 0.0
        %1007 = vmatpush.msra.mxu0 0.0
        %1008 = vmatpush.msra.mxu0 0.0
        %1009 = vmatpush.msra.mxu0 0.0
        %v1010 = vand.u32 %v863, 4294901760
        %1011 = vmatpush.msra.mxu0 %v1010
        %1012 = vmatpush.msra.mxu0 %v857
        %v1013 = vand.u32 %v860, 4294901760
        %1014 = vmatmul.f32.gmra.mxu0 %v1013
        %v1015 = vpop.f32.mrf.mxu0
        %v1016 = vadd.f32 %v994, %v1015
        %1017 = vdwg.mxu0
        %v1018 = vadd.f32 %v841, %v1016
        %vm1019 = vcmp.ge.s32.totalorder %v289, 4
        %v1020 = vsel %vm1019, 1, 0
        %v1021 = vmul.u32 %v1020, 4
        %v1022 = vsub.s32 %v289, %v1021
        %vm1023 = vcmp.eq.s32.totalorder %v1022, 0
        %s1024 = smul.u32 %s24, 2
        %s1025 = smul.u32 %s1024, 128
        %s1026 = sld [smem:[#allocation3 + %s1025]]
        %v1027 = vstv %s1026
        %v1028 = vsel %vm1023, %v1027, 0.0
        %s1029 = sadd.s32 1, %s1024
        %s1030 = smul.u32 %s1029, 128
        %s1031 = sld [smem:[#allocation3 + %s1030]]
        %v1032 = vstv %s1031
        %v1033 = vsel %vm1023, %v1032, 0.0
        %vm1034 = vcmp.eq.s32.totalorder %v1022, 1
        %s1035 = sadd.s32 %s1025, 1
        %s1036 = sld [smem:[#allocation3 + %s1035]]
        %v1037 = vstv %s1036
        %v1038 = vsel %vm1034, %v1037, %v1028
        %s1039 = sadd.s32 %s1030, 1
        %s1040 = sld [smem:[#allocation3 + %s1039]]
        %v1041 = vstv %s1040
        %v1042 = vsel %vm1034, %v1041, %v1033
        %vm1043 = vcmp.eq.s32.totalorder %v1022, 2
        %s1044 = sadd.s32 %s1025, 2
        %s1045 = sld [smem:[#allocation3 + %s1044]]
        %v1046 = vstv %s1045
        %v1047 = vsel %vm1043, %v1046, %v1038
        %s1048 = sadd.s32 %s1030, 2
        %s1049 = sld [smem:[#allocation3 + %s1048]]
        %v1050 = vstv %s1049
        %v1051 = vsel %vm1043, %v1050, %v1042
        %vm1052 = vcmp.eq.s32.totalorder %v1022, 3
        %s1053 = sadd.s32 %s1025, 3
        %s1054 = sld [smem:[#allocation3 + %s1053]]
        %v1055 = vstv %s1054
        %v1056 = vsel %vm1052, %v1055, %v1047
        %s1057 = sadd.s32 %s1030, 3
        %s1058 = sld [smem:[#allocation3 + %s1057]]
        %v1059 = vstv %s1058
        %v1060 = vsel %vm1052, %v1059, %v1051
        %v1061 = vmul.f32 %v1018, %v1056
        %v1062 = vadd.f32 %v1061, %v1060
        %vm1063 = vcmask 293888
        %1064 = vst.msk [vmem:[%s118] sm:$0xff] %vm1063, %v1062
        %s1065 = sand.u32 %s58, 1
        %s1066 = scalar_lea.sflag [#allocation5], %s1065
        %s1067 = sand.u32 %s58, 1
        %s1068 = smul.addr %s1067, 8
        %s1069 = scalar_lea.vmem [#allocation4], %s1068
        // Predicated region
        $region25: #{tpu_custom_call.1} parent=23 // pred_check
          %p1070 = pneg %p68
        $region26: #{tpu_custom_call.1} parent=23 // pred_check_branch
          %1072 = sbr.rel (%p1070) target = $region28
        $region27: #{tpu_custom_call.1} parent=23 // pred_region
          %1074 = vsyncadd %s1066, 0
          %s1075 = smul.addr %s24, 8
          %s1076 = scalar_lea.hbm %s2, %s1075
          %s1078 = sshll.u32 %s1069, 4
          %s1079 = int_to_ptr.vmem [resolvable:$true] %s1078
          %s1080 = sshll.u32 %s1076, 4
          %s1081 = int_to_ptr.hbm [resolvable:$true] %s1080
          %1083 = dma.vmem_to_hbm [thread:$0]  %s1079, 128, %s1081, %s1066
        $region28: #{tpu_custom_call.1} parent=23 // pred_fallthru
          _
      $region24: #{tpu_custom_call.1} parent=5 // pred_fallthru
        _
      %p1084 = scmp.le.s32.totalorder 2, %s19
      // Predicated region
      $region29: #{tpu_custom_call.1} parent=5 // pred_check
        %p1085 = pneg %p1084
      $region30: #{tpu_custom_call.1} parent=5 // pred_check_branch
        %1087 = sbr.rel (%p1085) target = $region32
      $region31: #{tpu_custom_call.1} parent=5 // pred_region
        %s1088 = ssub.s32 %s19, 2
        // Predicated region
        $region33: #{tpu_custom_call.1} parent=31 // pred_check
          %p1089 = pneg %p74
        $region34: #{tpu_custom_call.1} parent=31 // pred_check_branch
          %1091 = sbr.rel (%p1089) target = $region36
        $region35: #{tpu_custom_call.1} parent=31 // pred_region
          %s1092 = sand.u32 %s59, 1
          %s1093 = scalar_lea.sflag [#allocation5], %s1092
          %s1094 = sand.u32 %s59, 1
          %s1095 = smul.addr %s1094, 8
          %s1096 = scalar_lea.vmem [#allocation4], %s1095
          %1098 = dma.done %s1093, 128
        $region36: #{tpu_custom_call.1} parent=31 // pred_fallthru
          _
      $region32: #{tpu_custom_call.1} parent=5 // pred_fallthru
        _
    $region6: #{tpu_custom_call.1} parent=1 // loop_footer
      %s23 = sadd.s32 1, %s19
    $region7: #{tpu_custom_call.1} parent=1 // loop_footer_branch
      %18 = sbr.rel target = $region3
    $region8: #{tpu_custom_call.1} parent=1 // loop_exit
      _
    %1099 = vsyncpa [#allocation5], 1
    %s1100 = scalar_lea.sflag [#allocation5], 1
    %1101 = vsyncpa %s1100, 1

</llo_original>
